<compile_context>
chip_gen: v7x
topology: tpu7x:2x2x1
jax: 0.10.0
libtpu: 0.0.40
codegen_flags: <defaults>
</compile_context>

<pallas_src>
import functools

import jax
import jax.numpy as jnp
from jax import lax
from jax.experimental import pallas as pl
from jax.experimental.pallas import tpu as pltpu


def _round_up(n, m):
    return ((n + m - 1) // m) * m


def _cdiv(a, b):
    return -(-a // b)


def shallow_mlp_kernel(xT_ref,
                       w1_ref, b1_ref,
                       w2_ref, b2_ref,
                       w3_ref, b3_ref,
                       w4_ref, b4_ref,
                       w5_ref, b5_ref,
                       out_ref,
                       *, n_sub, sub, ew_dtype):
    # Static unroll over independent row sub-chunks: sub-chunk A's matmuls (MXU /
    # vex slot) interleave with sub-chunk B's bias/ReLU/cast work (VALU slot).
    for c in range(n_sub):
        xc = xT_ref[:, c * sub:(c + 1) * sub]          # (k_pad, sub) bf16, lane-dense

        # Layer 1: transposed-LHS matmul (contract dim 0 of both operands) so the x
        # tile stays lane-dense along batch; f32 accumulation on the MXU.
        h = lax.dot_general(xc, w1_ref[...],
                            dimension_numbers=(((0,), (0,)), ((), ())),
                            preferred_element_type=jnp.float32)      # (sub, hidden)
        h = jnp.maximum(h.astype(ew_dtype) + b1_ref[...], 0).astype(jnp.bfloat16)

        # Layers 2-4: bf16 MXU operands, f32 accumulation; bias+ReLU in ew_dtype
        # (bf16 on v6e/v7x, f32 on v5e which has no bf16 VPU).
        h = jnp.dot(h, w2_ref[...], preferred_element_type=jnp.float32)
        h = jnp.maximum(h.astype(ew_dtype) + b2_ref[...], 0).astype(jnp.bfloat16)

        h = jnp.dot(h, w3_ref[...], preferred_element_type=jnp.float32)
        h = jnp.maximum(h.astype(ew_dtype) + b3_ref[...], 0).astype(jnp.bfloat16)

        h = jnp.dot(h, w4_ref[...], preferred_element_type=jnp.float32)
        h = jnp.maximum(h.astype(ew_dtype) + b4_ref[...], 0).astype(jnp.bfloat16)

        # Layer 5 (out_dim == 1): contract on the LAST dims (trans-B matmul):
        #   (1, hidden) x (sub, hidden) -> (1, sub)
        # Lane-dense result -> unmasked full-lane stores, no explicit h.T relayout.
        yt = lax.dot_general(w5_ref[...], h,
                             dimension_numbers=(((1,), (1,)), ((), ())),
                             preferred_element_type=jnp.float32)
        yt = yt + b5_ref[...]                           # (1, 1) broadcasts over lanes
        out_ref[:, :, c * sub:(c + 1) * sub] = yt.reshape(1, 1, sub)


def shallow_mlp(x, params, *, block_b=2048):
    """x: (B, input_dim) f32.  params: list of (W, b) with W shaped (in, out)."""
    B, in_dim = x.shape
    (w1, b1), (w2, b2), (w3, b3), (w4, b4), (w5, b5) = params
    hidden = w1.shape[1]
    out_dim = w5.shape[1]
    assert out_dim == 1, "kernel specializes the final layer for out_dim == 1"

    # ---- generation gating (static, wrapper-time) ---------------------------------
    kind = jax.devices()[0].device_kind.lower()
    use_bf16_ew = ("v6" in kind) or ("v7" in kind)      # v5e has no bf16 VPU
    ew_dtype = jnp.bfloat16 if use_bf16_ew else jnp.float32
    two_cores = "v7" in kind                            # 2 TensorCores per chip
    vmem_limit = (32 << 20) if two_cores else (64 << 20)

    # ---- batch tiling: balanced tiles, even count on v7x --------------------------
    b8 = _round_up(max(B, 1), 8)
    if b8 <= block_b and not (two_cores and b8 >= 512):
        num_tiles, tb = 1, b8
    else:
        num_tiles = _cdiv(b8, block_b)
        if two_cores and num_tiles % 2 == 1:
            num_tiles += 1                              # both TCs get work
        tb = _round_up(_cdiv(b8, num_tiles), 128)       # balanced, lane-aligned
    b_pad = num_tiles * tb

    # Sub-chunks inside the tile (MXU/VPU interleave); keep each a multiple of 128.
    if tb >= 2048 and tb % 512 == 0:
        n_sub = 4
    elif tb >= 256 and tb % 256 == 0:
        n_sub = 2
    else:
        n_sub = 1
    sub = tb // n_sub

    # ---- operand prep (wrapper-side, outside the kernel) --------------------------
    k_pad = _round_up(in_dim, 8)
    # Transposed x, lane-dense along batch: (k_pad, b_pad) bf16.
    xT = jnp.pad(x.astype(jnp.bfloat16).T, ((0, k_pad - in_dim), (0, b_pad - B)))
    w1_p = jnp.pad(w1.astype(jnp.bfloat16), ((0, k_pad - in_dim), (0, 0)))
    w2_c = w2.astype(jnp.bfloat16)
    w3_c = w3.astype(jnp.bfloat16)
    w4_c = w4.astype(jnp.bfloat16)
    w5_r = w5.reshape(1, hidden).astype(jnp.bfloat16)   # row vector for the epilogue
    b1_r = b1.reshape(1, hidden).astype(ew_dtype)
    b2_r = b2.reshape(1, hidden).astype(ew_dtype)
    b3_r = b3.reshape(1, hidden).astype(ew_dtype)
    b4_r = b4.reshape(1, hidden).astype(ew_dtype)
    b5_r = b5.reshape(1, 1).astype(jnp.float32)

    def _x_map(i):                 # x^T tile: batch blocks along the lane axis
        return (0, i)

    def _const_map(i):             # weights/biases: same block every step -> resident
        return (0, 0)

    in_specs = [
        pl.BlockSpec((k_pad, tb), _x_map),             # x^T tile (pipelined)
        pl.BlockSpec((k_pad, hidden), _const_map),     # W1
        pl.BlockSpec((1, hidden), _const_map),         # b1
        pl.BlockSpec((hidden, hidden), _const_map),    # W2
        pl.BlockSpec((1, hidden), _const_map),         # b2
        pl.BlockSpec((hidden, hidden), _const_map),    # W3
        pl.BlockSpec((1, hidden), _const_map),         # b3
        pl.BlockSpec((hidden, hidden), _const_map),    # W4
        pl.BlockSpec((1, hidden), _const_map),         # b4
        pl.BlockSpec((1, hidden), _const_map),         # W5 (row)
        pl.BlockSpec((1, 1), _const_map),              # b5
    ]

    kernel = functools.partial(shallow_mlp_kernel,
                               n_sub=n_sub, sub=sub, ew_dtype=ew_dtype)

    out = pl.pallas_call(
        kernel,
        out_shape=jax.ShapeDtypeStruct((num_tiles, 1, tb), jnp.float32),
        grid=(num_tiles,),
        in_specs=in_specs,
        out_specs=pl.BlockSpec((1, 1, tb), lambda i: (i, 0, 0)),
        compiler_params=pltpu.CompilerParams(
            dimension_semantics=("parallel",),          # shard batch grid across TCs
            vmem_limit_bytes=vmem_limit),
    )(xT, w1_p, b1_r, w2_c, b2_r, w3_c, b3_r, w4_c, b4_r, w5_r, b5_r)

    # Lane-dense (num_tiles, 1, TB) slab -> (B, 1); drop the batch padding.
    return out.reshape(b_pad, 1)[:B]


def init_params(key, dims):
    """Deterministic init mimicking PyTorch Linear's U(-1/sqrt(fan_in), +)."""
    params = []
    for d_in, d_out in zip(dims[:-1], dims[1:]):
        key, kw, kb = jax.random.split(key, 3)
        bound = 1.0 / jnp.sqrt(d_in)
        w = jax.random.uniform(kw, (d_in, d_out), jnp.float32, -bound, bound)
        b = jax.random.uniform(kb, (d_out,), jnp.float32, -bound, bound)
        params.append((w, b))
    return params


def reference_mlp(x, params):
    h = x
    for i, (w, b) in enumerate(params):
        h = h @ w + b
        if i < len(params) - 1:
            h = jnp.maximum(h, 0.0)
    return h


if __name__ == "__main__":
    key = jax.random.PRNGKey(0)
    key, kx = jax.random.split(key)

    input_dim, hidden, output_dim = 4, 128, 1
    dims = [input_dim, hidden, hidden, hidden, hidden, output_dim]

    # Small demo: B deliberately NOT a multiple of the batch tile so the
    # multi-tile grid, ragged padding and the sub-chunked kernel body are exercised.
    B = 300
    block_b = 256          # production default is 2048; small tile for the demo

    x = jax.random.normal(kx, (B, input_dim), jnp.float32)
    params = init_params(key, dims)

    mlp = jax.jit(functools.partial(shallow_mlp, block_b=block_b))
    out = jax.block_until_ready(mlp(x, params))

    ref = reference_mlp(x, params)
    assert out.shape == (B, output_dim), out.shape
    # bf16 matmul operands (f32 accumulation) => ~1e-2-level error vs f32 reference.
    max_err = jnp.max(jnp.abs(out - ref))
    assert jnp.allclose(out, ref, atol=5e-2, rtol=5e-2), f"max abs err = {max_err}"

    print("KERNEL_OK")
</pallas_src>

<mosaic_0001>
module attributes {stable_mosaic.version = 11 : i64} {
  func.func @shallow_mlp_kernel(%arg0: i32, %arg1: memref<8x256xbf16, #tpu.memory_space<vmem>>, %arg2: memref<8x128xbf16, #tpu.memory_space<vmem>>, %arg3: memref<1x128xf32, #tpu.memory_space<vmem>>, %arg4: memref<128x128xbf16, #tpu.memory_space<vmem>>, %arg5: memref<1x128xf32, #tpu.memory_space<vmem>>, %arg6: memref<128x128xbf16, #tpu.memory_space<vmem>>, %arg7: memref<1x128xf32, #tpu.memory_space<vmem>>, %arg8: memref<128x128xbf16, #tpu.memory_space<vmem>>, %arg9: memref<1x128xf32, #tpu.memory_space<vmem>>, %arg10: memref<1x128xbf16, #tpu.memory_space<vmem>>, %arg11: memref<1x1xf32, #tpu.memory_space<vmem>>, %arg12: memref<1x1x256xf32, #tpu.memory_space<vmem>>) attributes {dimension_semantics = [#tpu.dimension_semantics<parallel>], iteration_bounds = array<i64: 2>, scalar_prefetch = 0 : i64, scratch_operands = 0 : i64, tpu.core_type = #tpu.core_type<tc>, window_params = [{transform_indices = @transform_0, window_bounds = array<i64: 8, 256>}, {pipeline_mode = #tpu.pipeline_mode<synchronous>, transform_indices = @transform_1, window_bounds = array<i64: 8, 128>}, {pipeline_mode = #tpu.pipeline_mode<synchronous>, transform_indices = @transform_2, window_bounds = array<i64: 1, 128>}, {pipeline_mode = #tpu.pipeline_mode<synchronous>, transform_indices = @transform_3, window_bounds = array<i64: 128, 128>}, {pipeline_mode = #tpu.pipeline_mode<synchronous>, transform_indices = @transform_4, window_bounds = array<i64: 1, 128>}, {pipeline_mode = #tpu.pipeline_mode<synchronous>, transform_indices = @transform_5, window_bounds = array<i64: 128, 128>}, {pipeline_mode = #tpu.pipeline_mode<synchronous>, transform_indices = @transform_6, window_bounds = array<i64: 1, 128>}, {pipeline_mode = #tpu.pipeline_mode<synchronous>, transform_indices = @transform_7, window_bounds = array<i64: 128, 128>}, {pipeline_mode = #tpu.pipeline_mode<synchronous>, transform_indices = @transform_8, window_bounds = array<i64: 1, 128>}, {pipeline_mode = #tpu.pipeline_mode<synchronous>, transform_indices = @transform_9, window_bounds = array<i64: 1, 128>}, {pipeline_mode = #tpu.pipeline_mode<synchronous>, transform_indices = @transform_10, window_bounds = array<i64: 1, 1>}, {transform_indices = @transform_11, window_bounds = array<i64: 1, 1, 256>}]} {
    %c0 = arith.constant 0 : index
    %c0_0 = arith.constant 0 : index
    %0 = vector.load %arg1[%c0, %c0_0] : memref<8x256xbf16, #tpu.memory_space<vmem>>, vector<8x128xbf16>
    %c0_1 = arith.constant 0 : index
    %c0_2 = arith.constant 0 : index
    %1 = vector.load %arg2[%c0_1, %c0_2] : memref<8x128xbf16, #tpu.memory_space<vmem>>, vector<8x128xbf16>
    %cst = arith.constant dense<0.000000e+00> : vector<128x128xf32>
    %2 = tpu.matmul %0, %1, %cst {dimension_numbers = #tpu.dot_dimension_numbers<[0], [0], [1], [1], [0, 1, 1, 1], [], []>} : vector<8x128xbf16>, vector<8x128xbf16>, vector<128x128xf32> -> vector<128x128xf32>
    %c0_3 = arith.constant 0 : index
    %c0_4 = arith.constant 0 : index
    %3 = vector.load %arg3[%c0_3, %c0_4] : memref<1x128xf32, #tpu.memory_space<vmem>>, vector<1x128xf32>
    %4 = vector.broadcast %3 : vector<1x128xf32> to vector<128x128xf32>
    %5 = arith.addf %2, %4 : vector<128x128xf32>
    %cst_5 = arith.constant 0.000000e+00 : f32
    %6 = vector.broadcast %cst_5 : f32 to vector<128x128xf32>
    %7 = arith.maximumf %5, %6 : vector<128x128xf32>
    %8 = arith.truncf %7 : vector<128x128xf32> to vector<128x128xbf16>
    %c0_6 = arith.constant 0 : index
    %c0_7 = arith.constant 0 : index
    %9 = vector.load %arg4[%c0_6, %c0_7] : memref<128x128xbf16, #tpu.memory_space<vmem>>, vector<128x128xbf16>
    %cst_8 = arith.constant dense<0.000000e+00> : vector<128x128xf32>
    %10 = tpu.matmul %8, %9, %cst_8 {dimension_numbers = #tpu.dot_dimension_numbers<[1], [0], [0], [1], [0, 0, 1, 1], [], []>} : vector<128x128xbf16>, vector<128x128xbf16>, vector<128x128xf32> -> vector<128x128xf32>
    %c0_9 = arith.constant 0 : index
    %c0_10 = arith.constant 0 : index
    %11 = vector.load %arg5[%c0_9, %c0_10] : memref<1x128xf32, #tpu.memory_space<vmem>>, vector<1x128xf32>
    %12 = vector.broadcast %11 : vector<1x128xf32> to vector<128x128xf32>
    %13 = arith.addf %10, %12 : vector<128x128xf32>
    %cst_11 = arith.constant 0.000000e+00 : f32
    %14 = vector.broadcast %cst_11 : f32 to vector<128x128xf32>
    %15 = arith.maximumf %13, %14 : vector<128x128xf32>
    %16 = arith.truncf %15 : vector<128x128xf32> to vector<128x128xbf16>
    %c0_12 = arith.constant 0 : index
    %c0_13 = arith.constant 0 : index
    %17 = vector.load %arg6[%c0_12, %c0_13] : memref<128x128xbf16, #tpu.memory_space<vmem>>, vector<128x128xbf16>
    %cst_14 = arith.constant dense<0.000000e+00> : vector<128x128xf32>
    %18 = tpu.matmul %16, %17, %cst_14 {dimension_numbers = #tpu.dot_dimension_numbers<[1], [0], [0], [1], [0, 0, 1, 1], [], []>} : vector<128x128xbf16>, vector<128x128xbf16>, vector<128x128xf32> -> vector<128x128xf32>
    %c0_15 = arith.constant 0 : index
    %c0_16 = arith.constant 0 : index
    %19 = vector.load %arg7[%c0_15, %c0_16] : memref<1x128xf32, #tpu.memory_space<vmem>>, vector<1x128xf32>
    %20 = vector.broadcast %19 : vector<1x128xf32> to vector<128x128xf32>
    %21 = arith.addf %18, %20 : vector<128x128xf32>
    %cst_17 = arith.constant 0.000000e+00 : f32
    %22 = vector.broadcast %cst_17 : f32 to vector<128x128xf32>
    %23 = arith.maximumf %21, %22 : vector<128x128xf32>
    %24 = arith.truncf %23 : vector<128x128xf32> to vector<128x128xbf16>
    %c0_18 = arith.constant 0 : index
    %c0_19 = arith.constant 0 : index
    %25 = vector.load %arg8[%c0_18, %c0_19] : memref<128x128xbf16, #tpu.memory_space<vmem>>, vector<128x128xbf16>
    %cst_20 = arith.constant dense<0.000000e+00> : vector<128x128xf32>
    %26 = tpu.matmul %24, %25, %cst_20 {dimension_numbers = #tpu.dot_dimension_numbers<[1], [0], [0], [1], [0, 0, 1, 1], [], []>} : vector<128x128xbf16>, vector<128x128xbf16>, vector<128x128xf32> -> vector<128x128xf32>
    %c0_21 = arith.constant 0 : index
    %c0_22 = arith.constant 0 : index
    %27 = vector.load %arg9[%c0_21, %c0_22] : memref<1x128xf32, #tpu.memory_space<vmem>>, vector<1x128xf32>
    %28 = vector.broadcast %27 : vector<1x128xf32> to vector<128x128xf32>
    %29 = arith.addf %26, %28 : vector<128x128xf32>
    %cst_23 = arith.constant 0.000000e+00 : f32
    %30 = vector.broadcast %cst_23 : f32 to vector<128x128xf32>
    %31 = arith.maximumf %29, %30 : vector<128x128xf32>
    %32 = arith.truncf %31 : vector<128x128xf32> to vector<128x128xbf16>
    %c0_24 = arith.constant 0 : index
    %c0_25 = arith.constant 0 : index
    %33 = vector.load %arg10[%c0_24, %c0_25] : memref<1x128xbf16, #tpu.memory_space<vmem>>, vector<1x128xbf16>
    %cst_26 = arith.constant dense<0.000000e+00> : vector<1x128xf32>
    %34 = tpu.matmul %33, %32, %cst_26 {dimension_numbers = #tpu.dot_dimension_numbers<[1], [1], [0], [0], [0, 0, 1, 0], [], []>} : vector<1x128xbf16>, vector<128x128xbf16>, vector<1x128xf32> -> vector<1x128xf32>
    %c0_27 = arith.constant 0 : index
    %c0_28 = arith.constant 0 : index
    %35 = vector.load %arg11[%c0_27, %c0_28] : memref<1x1xf32, #tpu.memory_space<vmem>>, vector<1x1xf32>
    %36 = vector.broadcast %35 : vector<1x1xf32> to vector<1x128xf32>
    %37 = arith.addf %34, %36 : vector<1x128xf32>
    %38 = vector.shape_cast %37 : vector<1x128xf32> to vector<1x1x128xf32>
    %c0_29 = arith.constant 0 : index
    %c0_30 = arith.constant 0 : index
    %c0_31 = arith.constant 0 : index
    %39 = vector.load %arg12[%c0_29, %c0_30, %c0_31] : memref<1x1x256xf32, #tpu.memory_space<vmem>>, vector<1x1x128xf32>
    tpu.vector_store %arg12[%c0_29, %c0_30, %c0_31], %38 {strides = array<i32>} : memref<1x1x256xf32, #tpu.memory_space<vmem>>, vector<1x1x128xf32>,
    %c0_32 = arith.constant 0 : index
    %c128 = arith.constant 128 : index
    %40 = vector.load %arg1[%c0_32, %c128] : memref<8x256xbf16, #tpu.memory_space<vmem>>, vector<8x128xbf16>
    %c0_33 = arith.constant 0 : index
    %c0_34 = arith.constant 0 : index
    %41 = vector.load %arg2[%c0_33, %c0_34] : memref<8x128xbf16, #tpu.memory_space<vmem>>, vector<8x128xbf16>
    %cst_35 = arith.constant dense<0.000000e+00> : vector<128x128xf32>
    %42 = tpu.matmul %40, %41, %cst_35 {dimension_numbers = #tpu.dot_dimension_numbers<[0], [0], [1], [1], [0, 1, 1, 1], [], []>} : vector<8x128xbf16>, vector<8x128xbf16>, vector<128x128xf32> -> vector<128x128xf32>
    %c0_36 = arith.constant 0 : index
    %c0_37 = arith.constant 0 : index
    %43 = vector.load %arg3[%c0_36, %c0_37] : memref<1x128xf32, #tpu.memory_space<vmem>>, vector<1x128xf32>
    %44 = vector.broadcast %43 : vector<1x128xf32> to vector<128x128xf32>
    %45 = arith.addf %42, %44 : vector<128x128xf32>
    %cst_38 = arith.constant 0.000000e+00 : f32
    %46 = vector.broadcast %cst_38 : f32 to vector<128x128xf32>
    %47 = arith.maximumf %45, %46 : vector<128x128xf32>
    %48 = arith.truncf %47 : vector<128x128xf32> to vector<128x128xbf16>
    %c0_39 = arith.constant 0 : index
    %c0_40 = arith.constant 0 : index
    %49 = vector.load %arg4[%c0_39, %c0_40] : memref<128x128xbf16, #tpu.memory_space<vmem>>, vector<128x128xbf16>
    %cst_41 = arith.constant dense<0.000000e+00> : vector<128x128xf32>
    %50 = tpu.matmul %48, %49, %cst_41 {dimension_numbers = #tpu.dot_dimension_numbers<[1], [0], [0], [1], [0, 0, 1, 1], [], []>} : vector<128x128xbf16>, vector<128x128xbf16>, vector<128x128xf32> -> vector<128x128xf32>
    %c0_42 = arith.constant 0 : index
    %c0_43 = arith.constant 0 : index
    %51 = vector.load %arg5[%c0_42, %c0_43] : memref<1x128xf32, #tpu.memory_space<vmem>>, vector<1x128xf32>
    %52 = vector.broadcast %51 : vector<1x128xf32> to vector<128x128xf32>
    %53 = arith.addf %50, %52 : vector<128x128xf32>
    %cst_44 = arith.constant 0.000000e+00 : f32
    %54 = vector.broadcast %cst_44 : f32 to vector<128x128xf32>
    %55 = arith.maximumf %53, %54 : vector<128x128xf32>
    %56 = arith.truncf %55 : vector<128x128xf32> to vector<128x128xbf16>
    %c0_45 = arith.constant 0 : index
    %c0_46 = arith.constant 0 : index
    %57 = vector.load %arg6[%c0_45, %c0_46] : memref<128x128xbf16, #tpu.memory_space<vmem>>, vector<128x128xbf16>
    %cst_47 = arith.constant dense<0.000000e+00> : vector<128x128xf32>
    %58 = tpu.matmul %56, %57, %cst_47 {dimension_numbers = #tpu.dot_dimension_numbers<[1], [0], [0], [1], [0, 0, 1, 1], [], []>} : vector<128x128xbf16>, vector<128x128xbf16>, vector<128x128xf32> -> vector<128x128xf32>
    %c0_48 = arith.constant 0 : index
    %c0_49 = arith.constant 0 : index
    %59 = vector.load %arg7[%c0_48, %c0_49] : memref<1x128xf32, #tpu.memory_space<vmem>>, vector<1x128xf32>
    %60 = vector.broadcast %59 : vector<1x128xf32> to vector<128x128xf32>
    %61 = arith.addf %58, %60 : vector<128x128xf32>
    %cst_50 = arith.constant 0.000000e+00 : f32
    %62 = vector.broadcast %cst_50 : f32 to vector<128x128xf32>
    %63 = arith.maximumf %61, %62 : vector<128x128xf32>
    %64 = arith.truncf %63 : vector<128x128xf32> to vector<128x128xbf16>
    %c0_51 = arith.constant 0 : index
    %c0_52 = arith.constant 0 : index
    %65 = vector.load %arg8[%c0_51, %c0_52] : memref<128x128xbf16, #tpu.memory_space<vmem>>, vector<128x128xbf16>
    %cst_53 = arith.constant dense<0.000000e+00> : vector<128x128xf32>
    %66 = tpu.matmul %64, %65, %cst_53 {dimension_numbers = #tpu.dot_dimension_numbers<[1], [0], [0], [1], [0, 0, 1, 1], [], []>} : vector<128x128xbf16>, vector<128x128xbf16>, vector<128x128xf32> -> vector<128x128xf32>
    %c0_54 = arith.constant 0 : index
    %c0_55 = arith.constant 0 : index
    %67 = vector.load %arg9[%c0_54, %c0_55] : memref<1x128xf32, #tpu.memory_space<vmem>>, vector<1x128xf32>
    %68 = vector.broadcast %67 : vector<1x128xf32> to vector<128x128xf32>
    %69 = arith.addf %66, %68 : vector<128x128xf32>
    %cst_56 = arith.constant 0.000000e+00 : f32
    %70 = vector.broadcast %cst_56 : f32 to vector<128x128xf32>
    %71 = arith.maximumf %69, %70 : vector<128x128xf32>
    %72 = arith.truncf %71 : vector<128x128xf32> to vector<128x128xbf16>
    %c0_57 = arith.constant 0 : index
    %c0_58 = arith.constant 0 : index
    %73 = vector.load %arg10[%c0_57, %c0_58] : memref<1x128xbf16, #tpu.memory_space<vmem>>, vector<1x128xbf16>
    %cst_59 = arith.constant dense<0.000000e+00> : vector<1x128xf32>
    %74 = tpu.matmul %73, %72, %cst_59 {dimension_numbers = #tpu.dot_dimension_numbers<[1], [1], [0], [0], [0, 0, 1, 0], [], []>} : vector<1x128xbf16>, vector<128x128xbf16>, vector<1x128xf32> -> vector<1x128xf32>
    %c0_60 = arith.constant 0 : index
    %c0_61 = arith.constant 0 : index
    %75 = vector.load %arg11[%c0_60, %c0_61] : memref<1x1xf32, #tpu.memory_space<vmem>>, vector<1x1xf32>
    %76 = vector.broadcast %75 : vector<1x1xf32> to vector<1x128xf32>
    %77 = arith.addf %74, %76 : vector<1x128xf32>
    %78 = vector.shape_cast %77 : vector<1x128xf32> to vector<1x1x128xf32>
    %c0_62 = arith.constant 0 : index
    %c0_63 = arith.constant 0 : index
    %c128_64 = arith.constant 128 : index
    %79 = vector.load %arg12[%c0_62, %c0_63, %c128_64] : memref<1x1x256xf32, #tpu.memory_space<vmem>>, vector<1x1x128xf32>
    tpu.vector_store %arg12[%c0_62, %c0_63, %c128_64], %78 {strides = array<i32>} : memref<1x1x256xf32, #tpu.memory_space<vmem>>, vector<1x1x128xf32>,
    return
  }
  func.func @transform_0(%arg0: i32) -> (i32, i32) {
    %c0_i32 = arith.constant 0 : i32
    %c0_i32_0 = arith.constant 0 : i32
    return %c0_i32, %arg0 : i32, i32
  }
  func.func @transform_1(%arg0: i32) -> (i32, i32) {
    %c0_i32 = arith.constant 0 : i32
    %c0_i32_0 = arith.constant 0 : i32
    %c0_i32_1 = arith.constant 0 : i32
    return %c0_i32, %c0_i32_0 : i32, i32
  }
  func.func @transform_2(%arg0: i32) -> (i32, i32) {
    %c0_i32 = arith.constant 0 : i32
    %c0_i32_0 = arith.constant 0 : i32
    %c0_i32_1 = arith.constant 0 : i32
    return %c0_i32, %c0_i32_0 : i32, i32
  }
  func.func @transform_3(%arg0: i32) -> (i32, i32) {
    %c0_i32 = arith.constant 0 : i32
    %c0_i32_0 = arith.constant 0 : i32
    %c0_i32_1 = arith.constant 0 : i32
    return %c0_i32, %c0_i32_0 : i32, i32
  }
  func.func @transform_4(%arg0: i32) -> (i32, i32) {
    %c0_i32 = arith.constant 0 : i32
    %c0_i32_0 = arith.constant 0 : i32
    %c0_i32_1 = arith.constant 0 : i32
    return %c0_i32, %c0_i32_0 : i32, i32
  }
  func.func @transform_5(%arg0: i32) -> (i32, i32) {
    %c0_i32 = arith.constant 0 : i32
    %c0_i32_0 = arith.constant 0 : i32
    %c0_i32_1 = arith.constant 0 : i32
    return %c0_i32, %c0_i32_0 : i32, i32
  }
  func.func @transform_6(%arg0: i32) -> (i32, i32) {
    %c0_i32 = arith.constant 0 : i32
    %c0_i32_0 = arith.constant 0 : i32
    %c0_i32_1 = arith.constant 0 : i32
    return %c0_i32, %c0_i32_0 : i32, i32
  }
  func.func @transform_7(%arg0: i32) -> (i32, i32) {
    %c0_i32 = arith.constant 0 : i32
    %c0_i32_0 = arith.constant 0 : i32
    %c0_i32_1 = arith.constant 0 : i32
    return %c0_i32, %c0_i32_0 : i32, i32
  }
  func.func @transform_8(%arg0: i32) -> (i32, i32) {
    %c0_i32 = arith.constant 0 : i32
    %c0_i32_0 = arith.constant 0 : i32
    %c0_i32_1 = arith.constant 0 : i32
    return %c0_i32, %c0_i32_0 : i32, i32
  }
  func.func @transform_9(%arg0: i32) -> (i32, i32) {
    %c0_i32 = arith.constant 0 : i32
    %c0_i32_0 = arith.constant 0 : i32
    %c0_i32_1 = arith.constant 0 : i32
    return %c0_i32, %c0_i32_0 : i32, i32
  }
  func.func @transform_10(%arg0: i32) -> (i32, i32) {
    %c0_i32 = arith.constant 0 : i32
    %c0_i32_0 = arith.constant 0 : i32
    %c0_i32_1 = arith.constant 0 : i32
    return %c0_i32, %c0_i32_0 : i32, i32
  }
  func.func @transform_11(%arg0: i32) -> (i32, i32, i32) {
    %c0_i32 = arith.constant 0 : i32
    %c0_i32_0 = arith.constant 0 : i32
    %c0_i32_1 = arith.constant 0 : i32
    return %arg0, %c0_i32, %c0_i32_0 : i32, i32, i32
  }
}

</mosaic_0001>

<llo_original>
// kernel: shallow_mlp.1
$region0: #{shallow_mlp.1}
  #allocation0 [shape = 'u32[]', space=smem, size = 0x4, offset = 0x4, fixed_abs, tag = 'smem constant byte address 0x4 - core index']
  #allocation1 [shape = 'u32[144,128]{1,0:T(1,128)}', space=vmem, size = 0x12000, scoped, tag = 'internal scratch']
  #allocation2 [shape = 'f32[1,1]{1,0:T(1,128)S(1)}', space=vmem, size = 0x200, scoped, tag = 'scoped memory for shallow_mlp.1']
  %s0 = inlined_call_operand.hbm [shape: bf16[8,512], index: 0, kind: input, shape index: {}]
  %s1 = inlined_call_operand.hbm [shape: bf16[8,128], index: 1, kind: input, shape index: {}]
  %s2 = inlined_call_operand.hbm [shape: f32[1,128], index: 2, kind: input, shape index: {}]
  %s3 = inlined_call_operand.hbm [shape: bf16[128,128], index: 3, kind: input, shape index: {}]
  %s4 = inlined_call_operand.hbm [shape: f32[1,128], index: 4, kind: input, shape index: {}]
  %s5 = inlined_call_operand.hbm [shape: bf16[128,128], index: 5, kind: input, shape index: {}]
  %s6 = inlined_call_operand.hbm [shape: f32[1,128], index: 6, kind: input, shape index: {}]
  %s7 = inlined_call_operand.hbm [shape: bf16[128,128], index: 7, kind: input, shape index: {}]
  %s8 = inlined_call_operand.hbm [shape: f32[1,128], index: 8, kind: input, shape index: {}]
  %s9 = inlined_call_operand.hbm [shape: bf16[1,128], index: 9, kind: input, shape index: {}]
  %s10 = inlined_call_operand.<no memory space> [shape: f32[1,1], index: 10, kind: input, shape index: {}]
  %s11 = inlined_call_operand.hbm [shape: f32[2,1,256], index: 11, kind: output, shape index: {}]
  %s12 = sld [smem:[#allocation0]]
  $region117: #{shallow_mlp.1} parent=0
    _
  %s14 = ssub.s32 1, %s12
  %s15 = scalar_select 0, %s14, %s12
  %v16 = vstv %s10
  %17 = vst [vmem:[#allocation2] sm:$0x1] %v16
  $region1: #{shallow_mlp.1} parent=0
    #allocation3 [shape = 'u8[8192]{0}', space=vmem, size = 0x2000, scoped, tag = 'input window, operand 0']
    #allocation4 [shape = 's32[2]{0}', space=sflag, size = 0x8, scoped, tag = 'scoped memory for shallow_mlp.1']
    #allocation5 [shape = 's32[2]{0}', space=sflag, size = 0x8, scoped, tag = 'scoped memory for shallow_mlp.1']
    #allocation6 [shape = 'u8[2048]{0}', space=vmem, size = 0x800, scoped, tag = 'input window, operand 1, single buffered']
    #allocation7 [shape = 's32[1]{0}', space=sflag, size = 0x4, scoped, tag = 'scoped memory for shallow_mlp.1']
    #allocation8 [shape = 'u8[512]{0}', space=vmem, size = 0x400, scoped, tag = 'input window, operand 2, single buffered']
    #allocation9 [shape = 'u8[32768]{0}', space=vmem, size = 0x8000, scoped, tag = 'input window, operand 3, single buffered']
    #allocation10 [shape = 's32[1]{0}', space=sflag, size = 0x4, scoped, tag = 'scoped memory for shallow_mlp.1']
    #allocation11 [shape = 'u8[512]{0}', space=vmem, size = 0x400, scoped, tag = 'input window, operand 4, single buffered']
    #allocation12 [shape = 'u8[32768]{0}', space=vmem, size = 0x8000, scoped, tag = 'input window, operand 5, single buffered']
    #allocation13 [shape = 's32[1]{0}', space=sflag, size = 0x4, scoped, tag = 'scoped memory for shallow_mlp.1']
    #allocation14 [shape = 'u8[512]{0}', space=vmem, size = 0x400, scoped, tag = 'input window, operand 6, single buffered']
    #allocation15 [shape = 'u8[32768]{0}', space=vmem, size = 0x8000, scoped, tag = 'input window, operand 7, single buffered']
    #allocation16 [shape = 's32[1]{0}', space=sflag, size = 0x4, scoped, tag = 'scoped memory for shallow_mlp.1']
    #allocation17 [shape = 'u8[512]{0}', space=vmem, size = 0x400, scoped, tag = 'input window, operand 8, single buffered']
    #allocation18 [shape = 'u8[512]{0}', space=vmem, size = 0x400, scoped, tag = 'input window, operand 9, single buffered']
    #allocation19 [shape = 's32[1]{0}', space=sflag, size = 0x4, scoped, tag = 'scoped memory for shallow_mlp.1']
    #allocation20 [shape = 'u8[2048]{0}', space=vmem, size = 0x800, scoped, tag = 'output window, operand 0']
    %18 = vsyncpa [#allocation4], 0
    %s19 = scalar_lea.sflag [#allocation4], 1
    %20 = vsyncpa %s19, 0
    %21 = vsyncpa [#allocation7], 0
    %22 = vsyncpa [#allocation10], 0
    %23 = vsyncpa [#allocation13], 0
    %24 = vsyncpa [#allocation16], 0
    %25 = vsyncpa [#allocation19], 0
    %26 = vsyncpa [#allocation5], 0
    %s27 = scalar_lea.sflag [#allocation5], 1
    %28 = vsyncpa %s27, 0
    loop: start=0, step=1, limit=4
    $region2: #{shallow_mlp.1} parent=1 // loop_pre_header
      _
    $region3: #{shallow_mlp.1} parent=1 // loop_header
      %s30 = sphi 0, %s34
      %p31 = scmp.ge.s32.totalorder %s30, 4
      %s40 = sphi 0, %s42
      %s43 = sphi 0, %s40
      %s44 = sphi 0, %s43
      %s60 = sphi 0, %s44
      %s64 = sphi 0, %s64
      %s66 = sphi 0, %s64
      %s67 = sphi 0, %s66
      %s81 = sphi 0, %s67
      %s85 = sphi 0, %s85
      %s87 = sphi 0, %s85
      %s88 = sphi 0, %s87
      %s102 = sphi 0, %s88
      %s106 = sphi 0, %s106
      %s108 = sphi 0, %s106
      %s109 = sphi 0, %s108
      %s123 = sphi 0, %s109
      %s127 = sphi 0, %s127
      %s129 = sphi 0, %s127
      %s130 = sphi 0, %s129
      %s144 = sphi 0, %s130
      %s148 = sphi 0, %s148
      %s150 = sphi 0, %s148
      %s151 = sphi 0, %s150
      %s165 = sphi 0, %s151
      %s169 = sphi 0, %s169
      %s171 = sphi 0, %s169
      %s172 = sphi 0, %s171
      %s186 = sphi 0, %s172
      %s190 = sphi 0, %s190
      %s192 = sphi 0, %s190
      %s193 = sphi 0, %s192
      %s207 = sphi 0, %s193
      %s211 = sphi 0, %s211
      %s213 = sphi 0, %s211
      %s214 = sphi 0, %s213
      %s228 = sphi 0, %s214
      %s232 = sphi 0, %s232
      %s234 = sphi 0, %s232
      %s235 = sphi 0, %s234
      %s249 = sphi 0, %s235
      %s253 = sphi 0, %s253
      %s255 = sphi 0, %s253
      %s256 = sphi 0, %s255
      %s270 = sphi 0, %s256
      %s276 = sphi 0, %s278
      %s279 = sphi 0, %s276
      %s280 = sphi 0, %s279
      %s296 = sphi 0, %s280
    $region4: #{shallow_mlp.1} parent=1 // loop_header_branch
      %33 = sbr.rel (%p31) target = $region8
    $region5: #{shallow_mlp.1} parent=1 // loop_body
      %s35 = ssub.s32 %s30, 1
      %s36 = ssub.s32 %s30, 2
      %s37 = sadd.s32 %s30, 1
      %s38 = ssub.s32 %s30, %s37
      %p39 = scmp.eq.s32.totalorder %s38, 0
      %s41 = sadd.s32 %s40, 1
      %s42 = scalar_select %p39, %s40, %s41
      %p45 = pneg %p39
      %p46 = scmp.eq.s32.totalorder %s30, 1
      %p47 = por %p45, %p46
      %p48 = scmp.ne.s32.totalorder %s40, %s43
      %p49 = scmp.eq.s32.totalorder %s30, 0
      %p50 = por %p48, %p49
      %p51 = scmp.ne.s32.totalorder %s40, %s43
      %p52 = scmp.eq.s32.totalorder %s35, 1
      %p53 = por %p51, %p52
      %p54 = scmp.ne.s32.totalorder %s43, %s44
      %p55 = scmp.eq.s32.totalorder %s35, 0
      %p56 = por %p54, %p55
      %p57 = scmp.ne.s32.totalorder %s43, %s44
      %p58 = scmp.eq.s32.totalorder %s36, 1
      %p59 = por %p57, %p58
      %p61 = scmp.ne.s32.totalorder %s44, %s60
      %p62 = scmp.eq.s32.totalorder %s36, 0
      %p63 = por %p61, %p62
      %s65 = sadd.s32 %s64, 1
      %p68 = scmp.eq.s32.totalorder %s30, 1
      %p69 = scmp.ne.s32.totalorder %s64, %s66
      %p70 = scmp.eq.s32.totalorder %s30, 0
      %p71 = por %p69, %p70
      %p72 = scmp.ne.s32.totalorder %s64, %s66
      %p73 = scmp.eq.s32.totalorder %s35, 1
      %p74 = por %p72, %p73
      %p75 = scmp.ne.s32.totalorder %s66, %s67
      %p76 = scmp.eq.s32.totalorder %s35, 0
      %p77 = por %p75, %p76
      %p78 = scmp.ne.s32.totalorder %s66, %s67
      %p79 = scmp.eq.s32.totalorder %s36, 1
      %p80 = por %p78, %p79
      %p82 = scmp.ne.s32.totalorder %s67, %s81
      %p83 = scmp.eq.s32.totalorder %s36, 0
      %p84 = por %p82, %p83
      %s86 = sadd.s32 %s85, 1
      %p89 = scmp.eq.s32.totalorder %s30, 1
      %p90 = scmp.ne.s32.totalorder %s85, %s87
      %p91 = scmp.eq.s32.totalorder %s30, 0
      %p92 = por %p90, %p91
      %p93 = scmp.ne.s32.totalorder %s85, %s87
      %p94 = scmp.eq.s32.totalorder %s35, 1
      %p95 = por %p93, %p94
      %p96 = scmp.ne.s32.totalorder %s87, %s88
      %p97 = scmp.eq.s32.totalorder %s35, 0
      %p98 = por %p96, %p97
      %p99 = scmp.ne.s32.totalorder %s87, %s88
      %p100 = scmp.eq.s32.totalorder %s36, 1
      %p101 = por %p99, %p100
      %p103 = scmp.ne.s32.totalorder %s88, %s102
      %p104 = scmp.eq.s32.totalorder %s36, 0
      %p105 = por %p103, %p104
      %s107 = sadd.s32 %s106, 1
      %p110 = scmp.eq.s32.totalorder %s30, 1
      %p111 = scmp.ne.s32.totalorder %s106, %s108
      %p112 = scmp.eq.s32.totalorder %s30, 0
      %p113 = por %p111, %p112
      %p114 = scmp.ne.s32.totalorder %s106, %s108
      %p115 = scmp.eq.s32.totalorder %s35, 1
      %p116 = por %p114, %p115
      %p117 = scmp.ne.s32.totalorder %s108, %s109
      %p118 = scmp.eq.s32.totalorder %s35, 0
      %p119 = por %p117, %p118
      %p120 = scmp.ne.s32.totalorder %s108, %s109
      %p121 = scmp.eq.s32.totalorder %s36, 1
      %p122 = por %p120, %p121
      %p124 = scmp.ne.s32.totalorder %s109, %s123
      %p125 = scmp.eq.s32.totalorder %s36, 0
      %p126 = por %p124, %p125
      %s128 = sadd.s32 %s127, 1
      %p131 = scmp.eq.s32.totalorder %s30, 1
      %p132 = scmp.ne.s32.totalorder %s127, %s129
      %p133 = scmp.eq.s32.totalorder %s30, 0
      %p134 = por %p132, %p133
      %p135 = scmp.ne.s32.totalorder %s127, %s129
      %p136 = scmp.eq.s32.totalorder %s35, 1
      %p137 = por %p135, %p136
      %p138 = scmp.ne.s32.totalorder %s129, %s130
      %p139 = scmp.eq.s32.totalorder %s35, 0
      %p140 = por %p138, %p139
      %p141 = scmp.ne.s32.totalorder %s129, %s130
      %p142 = scmp.eq.s32.totalorder %s36, 1
      %p143 = por %p141, %p142
      %p145 = scmp.ne.s32.totalorder %s130, %s144
      %p146 = scmp.eq.s32.totalorder %s36, 0
      %p147 = por %p145, %p146
      %s149 = sadd.s32 %s148, 1
      %p152 = scmp.eq.s32.totalorder %s30, 1
      %p153 = scmp.ne.s32.totalorder %s148, %s150
      %p154 = scmp.eq.s32.totalorder %s30, 0
      %p155 = por %p153, %p154
      %p156 = scmp.ne.s32.totalorder %s148, %s150
      %p157 = scmp.eq.s32.totalorder %s35, 1
      %p158 = por %p156, %p157
      %p159 = scmp.ne.s32.totalorder %s150, %s151
      %p160 = scmp.eq.s32.totalorder %s35, 0
      %p161 = por %p159, %p160
      %p162 = scmp.ne.s32.totalorder %s150, %s151
      %p163 = scmp.eq.s32.totalorder %s36, 1
      %p164 = por %p162, %p163
      %p166 = scmp.ne.s32.totalorder %s151, %s165
      %p167 = scmp.eq.s32.totalorder %s36, 0
      %p168 = por %p166, %p167
      %s170 = sadd.s32 %s169, 1
      %p173 = scmp.eq.s32.totalorder %s30, 1
      %p174 = scmp.ne.s32.totalorder %s169, %s171
      %p175 = scmp.eq.s32.totalorder %s30, 0
      %p176 = por %p174, %p175
      %p177 = scmp.ne.s32.totalorder %s169, %s171
      %p178 = scmp.eq.s32.totalorder %s35, 1
      %p179 = por %p177, %p178
      %p180 = scmp.ne.s32.totalorder %s171, %s172
      %p181 = scmp.eq.s32.totalorder %s35, 0
      %p182 = por %p180, %p181
      %p183 = scmp.ne.s32.totalorder %s171, %s172
      %p184 = scmp.eq.s32.totalorder %s36, 1
      %p185 = por %p183, %p184
      %p187 = scmp.ne.s32.totalorder %s172, %s186
      %p188 = scmp.eq.s32.totalorder %s36, 0
      %p189 = por %p187, %p188
      %s191 = sadd.s32 %s190, 1
      %p194 = scmp.eq.s32.totalorder %s30, 1
      %p195 = scmp.ne.s32.totalorder %s190, %s192
      %p196 = scmp.eq.s32.totalorder %s30, 0
      %p197 = por %p195, %p196
      %p198 = scmp.ne.s32.totalorder %s190, %s192
      %p199 = scmp.eq.s32.totalorder %s35, 1
      %p200 = por %p198, %p199
      %p201 = scmp.ne.s32.totalorder %s192, %s193
      %p202 = scmp.eq.s32.totalorder %s35, 0
      %p203 = por %p201, %p202
      %p204 = scmp.ne.s32.totalorder %s192, %s193
      %p205 = scmp.eq.s32.totalorder %s36, 1
      %p206 = por %p204, %p205
      %p208 = scmp.ne.s32.totalorder %s193, %s207
      %p209 = scmp.eq.s32.totalorder %s36, 0
      %p210 = por %p208, %p209
      %s212 = sadd.s32 %s211, 1
      %p215 = scmp.eq.s32.totalorder %s30, 1
      %p216 = scmp.ne.s32.totalorder %s211, %s213
      %p217 = scmp.eq.s32.totalorder %s30, 0
      %p218 = por %p216, %p217
      %p219 = scmp.ne.s32.totalorder %s211, %s213
      %p220 = scmp.eq.s32.totalorder %s35, 1
      %p221 = por %p219, %p220
      %p222 = scmp.ne.s32.totalorder %s213, %s214
      %p223 = scmp.eq.s32.totalorder %s35, 0
      %p224 = por %p222, %p223
      %p225 = scmp.ne.s32.totalorder %s213, %s214
      %p226 = scmp.eq.s32.totalorder %s36, 1
      %p227 = por %p225, %p226
      %p229 = scmp.ne.s32.totalorder %s214, %s228
      %p230 = scmp.eq.s32.totalorder %s36, 0
      %p231 = por %p229, %p230
      %s233 = sadd.s32 %s232, 1
      %p236 = scmp.eq.s32.totalorder %s30, 1
      %p237 = scmp.ne.s32.totalorder %s232, %s234
      %p238 = scmp.eq.s32.totalorder %s30, 0
      %p239 = por %p237, %p238
      %p240 = scmp.ne.s32.totalorder %s232, %s234
      %p241 = scmp.eq.s32.totalorder %s35, 1
      %p242 = por %p240, %p241
      %p243 = scmp.ne.s32.totalorder %s234, %s235
      %p244 = scmp.eq.s32.totalorder %s35, 0
      %p245 = por %p243, %p244
      %p246 = scmp.ne.s32.totalorder %s234, %s235
      %p247 = scmp.eq.s32.totalorder %s36, 1
      %p248 = por %p246, %p247
      %p250 = scmp.ne.s32.totalorder %s235, %s249
      %p251 = scmp.eq.s32.totalorder %s36, 0
      %p252 = por %p250, %p251
      %s254 = sadd.s32 %s253, 1
      %p257 = scmp.eq.s32.totalorder %s30, 1
      %p258 = scmp.ne.s32.totalorder %s253, %s255
      %p259 = scmp.eq.s32.totalorder %s30, 0
      %p260 = por %p258, %p259
      %p261 = scmp.ne.s32.totalorder %s253, %s255
      %p262 = scmp.eq.s32.totalorder %s35, 1
      %p263 = por %p261, %p262
      %p264 = scmp.ne.s32.totalorder %s255, %s256
      %p265 = scmp.eq.s32.totalorder %s35, 0
      %p266 = por %p264, %p265
      %p267 = scmp.ne.s32.totalorder %s255, %s256
      %p268 = scmp.eq.s32.totalorder %s36, 1
      %p269 = por %p267, %p268
      %p271 = scmp.ne.s32.totalorder %s256, %s270
      %p272 = scmp.eq.s32.totalorder %s36, 0
      %p273 = por %p271, %p272
      %s274 = ssub.s32 %s30, %s37
      %p275 = scmp.eq.s32.totalorder %s274, 0
      %s277 = sadd.s32 %s276, 1
      %s278 = scalar_select %p275, %s276, %s277
      %p281 = pneg %p275
      %p282 = scmp.eq.s32.totalorder %s30, 1
      %p283 = por %p281, %p282
      %p284 = scmp.ne.s32.totalorder %s276, %s279
      %p285 = scmp.eq.s32.totalorder %s30, 0
      %p286 = por %p284, %p285
      %p287 = scmp.ne.s32.totalorder %s276, %s279
      %p288 = scmp.eq.s32.totalorder %s35, 1
      %p289 = por %p287, %p288
      %p290 = scmp.ne.s32.totalorder %s279, %s280
      %p291 = scmp.eq.s32.totalorder %s35, 0
      %p292 = por %p290, %p291
      %p293 = scmp.ne.s32.totalorder %s279, %s280
      %p294 = scmp.eq.s32.totalorder %s36, 1
      %p295 = por %p293, %p294
      %p297 = scmp.ne.s32.totalorder %s280, %s296
      %p298 = scmp.eq.s32.totalorder %s36, 0
      %p299 = por %p297, %p298
      %p300 = scmp.le.s32.totalorder 1, %s30
      %p301 = scmp.lt.s32.totalorder %s30, 3
      %p302 = pnand %p300, %p301
      %p303 = pneg %p302
      // Predicated region
      $region9: #{shallow_mlp.1} parent=5 // pred_check
        _
      $region10: #{shallow_mlp.1} parent=5 // pred_check_branch
        %305 = sbr.rel (%p302) target = $region12
      $region11: #{shallow_mlp.1} parent=5 // pred_region
        %s306 = ssub.s32 %s30, 1
        // Predicated region
        $region13: #{shallow_mlp.1} parent=11 // pred_check
          %p307 = pneg %p77
        $region14: #{shallow_mlp.1} parent=11 // pred_check_branch
          %309 = sbr.rel (%p307) target = $region16
        $region15: #{shallow_mlp.1} parent=11 // pred_region
          %s311 = ssub.s32 64, 64
          %312 = vsyncadd [#allocation7], %s311
          %s314 = sshll.u32 [#allocation6], 4
          %s315 = int_to_ptr.vmem [resolvable:$true] %s314
          %317 = dma.hbm_to_vmem [thread:$0]  %s1, 64, %s315, [#allocation7]
        $region16: #{shallow_mlp.1} parent=11 // pred_fallthru
          _
        // Predicated region
        $region17: #{shallow_mlp.1} parent=11 // pred_check
          %p318 = pneg %p98
        $region18: #{shallow_mlp.1} parent=11 // pred_check_branch
          %320 = sbr.rel (%p318) target = $region20
        $region19: #{shallow_mlp.1} parent=11 // pred_region
          %s322 = ssub.s32 16, 16
          %323 = vsyncadd [#allocation7], %s322
          %s325 = sshll.u32 [#allocation8], 4
          %s326 = int_to_ptr.vmem [resolvable:$true] %s325
          %328 = dma.hbm_to_vmem [thread:$0]  %s2, 16, %s326, [#allocation7]
        $region20: #{shallow_mlp.1} parent=11 // pred_fallthru
          _
        // Predicated region
        $region21: #{shallow_mlp.1} parent=11 // pred_check
          %p329 = pneg %p119
        $region22: #{shallow_mlp.1} parent=11 // pred_check_branch
          %331 = sbr.rel (%p329) target = $region24
        $region23: #{shallow_mlp.1} parent=11 // pred_region
          %s333 = ssub.s32 1024, 1024
          %334 = vsyncadd [#allocation10], %s333
          %s335 = sshll.u32 [#allocation9], 4
          %s336 = int_to_ptr.vmem [resolvable:$true] %s335
          %341 = dma.hbm_to_vmem [thread:$0]  %s3, 1024, %s336, [#allocation10], 64, 64, 4
        $region24: #{shallow_mlp.1} parent=11 // pred_fallthru
          _
        // Predicated region
        $region25: #{shallow_mlp.1} parent=11 // pred_check
          %p342 = pneg %p140
        $region26: #{shallow_mlp.1} parent=11 // pred_check_branch
          %344 = sbr.rel (%p342) target = $region28
        $region27: #{shallow_mlp.1} parent=11 // pred_region
          %s346 = ssub.s32 16, 16
          %347 = vsyncadd [#allocation10], %s346
          %s349 = sshll.u32 [#allocation11], 4
          %s350 = int_to_ptr.vmem [resolvable:$true] %s349
          %352 = dma.hbm_to_vmem [thread:$0]  %s4, 16, %s350, [#allocation10]
        $region28: #{shallow_mlp.1} parent=11 // pred_fallthru
          _
        // Predicated region
        $region29: #{shallow_mlp.1} parent=11 // pred_check
          %p353 = pneg %p161
        $region30: #{shallow_mlp.1} parent=11 // pred_check_branch
          %355 = sbr.rel (%p353) target = $region32
        $region31: #{shallow_mlp.1} parent=11 // pred_region
          %s357 = ssub.s32 1024, 1024
          %358 = vsyncadd [#allocation13], %s357
          %s359 = sshll.u32 [#allocation12], 4
          %s360 = int_to_ptr.vmem [resolvable:$true] %s359
          %365 = dma.hbm_to_vmem [thread:$0]  %s5, 1024, %s360, [#allocation13], 64, 64, 4
        $region32: #{shallow_mlp.1} parent=11 // pred_fallthru
          _
        // Predicated region
        $region33: #{shallow_mlp.1} parent=11 // pred_check
          %p366 = pneg %p182
        $region34: #{shallow_mlp.1} parent=11 // pred_check_branch
          %368 = sbr.rel (%p366) target = $region36
        $region35: #{shallow_mlp.1} parent=11 // pred_region
          %s370 = ssub.s32 16, 16
          %371 = vsyncadd [#allocation13], %s370
          %s373 = sshll.u32 [#allocation14], 4
          %s374 = int_to_ptr.vmem [resolvable:$true] %s373
          %376 = dma.hbm_to_vmem [thread:$0]  %s6, 16, %s374, [#allocation13]
        $region36: #{shallow_mlp.1} parent=11 // pred_fallthru
          _
        // Predicated region
        $region37: #{shallow_mlp.1} parent=11 // pred_check
          %p377 = pneg %p203
        $region38: #{shallow_mlp.1} parent=11 // pred_check_branch
          %379 = sbr.rel (%p377) target = $region40
        $region39: #{shallow_mlp.1} parent=11 // pred_region
          %s381 = ssub.s32 1024, 1024
          %382 = vsyncadd [#allocation16], %s381
          %s383 = sshll.u32 [#allocation15], 4
          %s384 = int_to_ptr.vmem [resolvable:$true] %s383
          %389 = dma.hbm_to_vmem [thread:$0]  %s7, 1024, %s384, [#allocation16], 64, 64, 4
        $region40: #{shallow_mlp.1} parent=11 // pred_fallthru
          _
        // Predicated region
        $region41: #{shallow_mlp.1} parent=11 // pred_check
          %p390 = pneg %p224
        $region42: #{shallow_mlp.1} parent=11 // pred_check_branch
          %392 = sbr.rel (%p390) target = $region44
        $region43: #{shallow_mlp.1} parent=11 // pred_region
          %s394 = ssub.s32 16, 16
          %395 = vsyncadd [#allocation16], %s394
          %s397 = sshll.u32 [#allocation17], 4
          %s398 = int_to_ptr.vmem [resolvable:$true] %s397
          %400 = dma.hbm_to_vmem [thread:$0]  %s8, 16, %s398, [#allocation16]
        $region44: #{shallow_mlp.1} parent=11 // pred_fallthru
          _
        // Predicated region
        $region45: #{shallow_mlp.1} parent=11 // pred_check
          %p401 = pneg %p245
        $region46: #{shallow_mlp.1} parent=11 // pred_check_branch
          %403 = sbr.rel (%p401) target = $region48
        $region47: #{shallow_mlp.1} parent=11 // pred_region
          %s405 = ssub.s32 16, 16
          %406 = vsyncadd [#allocation19], %s405
          %s408 = sshll.u32 [#allocation18], 4
          %s409 = int_to_ptr.vmem [resolvable:$true] %s408
          %411 = dma.hbm_to_vmem [thread:$0]  %s9, 16, %s409, [#allocation19]
        $region48: #{shallow_mlp.1} parent=11 // pred_fallthru
          _
        // Predicated region
        $region49: #{shallow_mlp.1} parent=11 // pred_check
          %p412 = pneg %p266
        $region50: #{shallow_mlp.1} parent=11 // pred_check_branch
          %414 = sbr.rel (%p412) target = $region52
        $region51: #{shallow_mlp.1} parent=11 // pred_region
          _
        $region52: #{shallow_mlp.1} parent=11 // pred_fallthru
          _
      $region12: #{shallow_mlp.1} parent=5 // pred_fallthru
        _
      %p415 = scmp.lt.s32.totalorder %s30, 2
      // Predicated region
      $region53: #{shallow_mlp.1} parent=5 // pred_check
        %p416 = pneg %p415
      $region54: #{shallow_mlp.1} parent=5 // pred_check_branch
        %418 = sbr.rel (%p416) target = $region56
      $region55: #{shallow_mlp.1} parent=5 // pred_region
        // Predicated region
        $region57: #{shallow_mlp.1} parent=55 // pred_check
          %p419 = pneg %p50
        $region58: #{shallow_mlp.1} parent=55 // pred_check_branch
          %421 = sbr.rel (%p419) target = $region60
        $region59: #{shallow_mlp.1} parent=55 // pred_region
          %s422 = sand.u32 %s40, 1
          %s423 = scalar_lea.sflag [#allocation4], %s422
          %s424 = sand.u32 %s40, 1
          %s425 = smul.addr %s424, 8
          %s426 = scalar_lea.vmem [#allocation3], %s425
          %s427 = smul.u32 2, %s30
          %s429 = ssub.s32 128, 128
          %430 = vsyncadd %s423, %s429
          %s431 = smul.addr %s427, 64
          %s432 = scalar_lea.hbm %s0, %s431
          %s434 = sshll.u32 %s426, 4
          %s435 = int_to_ptr.vmem [resolvable:$true] %s434
          %437 = dma.hbm_to_vmem [thread:$0]  %s432, 128, %s435, %s423
        $region60: #{shallow_mlp.1} parent=55 // pred_fallthru
          _
      $region56: #{shallow_mlp.1} parent=5 // pred_fallthru
        _
      %p438 = scmp.le.s32.totalorder 1, %s30
      %p439 = scmp.lt.s32.totalorder %s30, 3
      %p440 = pnand %p438, %p439
      %p441 = pneg %p440
      // Predicated region
      $region61: #{shallow_mlp.1} parent=5 // pred_check
        _
      $region62: #{shallow_mlp.1} parent=5 // pred_check_branch
        %443 = sbr.rel (%p440) target = $region64
      $region63: #{shallow_mlp.1} parent=5 // pred_region
        %s444 = ssub.s32 %s30, 1
        %s445 = sand.u32 %s43, 1
        %s446 = scalar_lea.sflag [#allocation4], %s445
        %s447 = sand.u32 %s43, 1
        %s448 = smul.addr %s447, 8
        %s449 = scalar_lea.vmem [#allocation3], %s448
        // Predicated region
        $region65: #{shallow_mlp.1} parent=63 // pred_check
          %p450 = pneg %p56
        $region66: #{shallow_mlp.1} parent=63 // pred_check_branch
          %452 = sbr.rel (%p450) target = $region68
        $region67: #{shallow_mlp.1} parent=63 // pred_region
          %453 = dma.done %s446, 128
        $region68: #{shallow_mlp.1} parent=63 // pred_fallthru
          _
        // Predicated region
        $region69: #{shallow_mlp.1} parent=63 // pred_check
          %p454 = pneg %p77
        $region70: #{shallow_mlp.1} parent=63 // pred_check_branch
          %456 = sbr.rel (%p454) target = $region72
        $region71: #{shallow_mlp.1} parent=63 // pred_region
          %457 = dma.done [#allocation7], 64
        $region72: #{shallow_mlp.1} parent=63 // pred_fallthru
          _
        // Predicated region
        $region73: #{shallow_mlp.1} parent=63 // pred_check
          %p458 = pneg %p98
        $region74: #{shallow_mlp.1} parent=63 // pred_check_branch
          %460 = sbr.rel (%p458) target = $region76
        $region75: #{shallow_mlp.1} parent=63 // pred_region
          %461 = dma.done [#allocation7], 16
        $region76: #{shallow_mlp.1} parent=63 // pred_fallthru
          _
        // Predicated region
        $region77: #{shallow_mlp.1} parent=63 // pred_check
          %p462 = pneg %p119
        $region78: #{shallow_mlp.1} parent=63 // pred_check_branch
          %464 = sbr.rel (%p462) target = $region80
        $region79: #{shallow_mlp.1} parent=63 // pred_region
          %465 = dma.done [#allocation10], 1024
        $region80: #{shallow_mlp.1} parent=63 // pred_fallthru
          _
        // Predicated region
        $region81: #{shallow_mlp.1} parent=63 // pred_check
          %p466 = pneg %p140
        $region82: #{shallow_mlp.1} parent=63 // pred_check_branch
          %468 = sbr.rel (%p466) target = $region84
        $region83: #{shallow_mlp.1} parent=63 // pred_region
          %469 = dma.done [#allocation10], 16
        $region84: #{shallow_mlp.1} parent=63 // pred_fallthru
          _
        // Predicated region
        $region85: #{shallow_mlp.1} parent=63 // pred_check
          %p470 = pneg %p161
        $region86: #{shallow_mlp.1} parent=63 // pred_check_branch
          %472 = sbr.rel (%p470) target = $region88
        $region87: #{shallow_mlp.1} parent=63 // pred_region
          %473 = dma.done [#allocation13], 1024
        $region88: #{shallow_mlp.1} parent=63 // pred_fallthru
          _
        // Predicated region
        $region89: #{shallow_mlp.1} parent=63 // pred_check
          %p474 = pneg %p182
        $region90: #{shallow_mlp.1} parent=63 // pred_check_branch
          %476 = sbr.rel (%p474) target = $region92
        $region91: #{shallow_mlp.1} parent=63 // pred_region
          %477 = dma.done [#allocation13], 16
        $region92: #{shallow_mlp.1} parent=63 // pred_fallthru
          _
        // Predicated region
        $region93: #{shallow_mlp.1} parent=63 // pred_check
          %p478 = pneg %p203
        $region94: #{shallow_mlp.1} parent=63 // pred_check_branch
          %480 = sbr.rel (%p478) target = $region96
        $region95: #{shallow_mlp.1} parent=63 // pred_region
          %481 = dma.done [#allocation16], 1024
        $region96: #{shallow_mlp.1} parent=63 // pred_fallthru
          _
        // Predicated region
        $region97: #{shallow_mlp.1} parent=63 // pred_check
          %p482 = pneg %p224
        $region98: #{shallow_mlp.1} parent=63 // pred_check_branch
          %484 = sbr.rel (%p482) target = $region100
        $region99: #{shallow_mlp.1} parent=63 // pred_region
          %485 = dma.done [#allocation16], 16
        $region100: #{shallow_mlp.1} parent=63 // pred_fallthru
          _
        // Predicated region
        $region101: #{shallow_mlp.1} parent=63 // pred_check
          %p486 = pneg %p245
        $region102: #{shallow_mlp.1} parent=63 // pred_check_branch
          %488 = sbr.rel (%p486) target = $region104
        $region103: #{shallow_mlp.1} parent=63 // pred_region
          %489 = dma.done [#allocation19], 16
        $region104: #{shallow_mlp.1} parent=63 // pred_fallthru
          _
        %s490 = sand.u32 %s43, 1
        %s491 = scalar_lea.sflag [#allocation4], %s490
        %s492 = sand.u32 %s43, 1
        %s493 = smul.addr %s492, 8
        %s494 = scalar_lea.vmem [#allocation3], %s493
        %p495 = pneg %p56
        %p496 = pneg %p53
        %p497 = pneg %p77
        %p498 = pneg %p74
        %p499 = pneg %p98
        %p500 = pneg %p95
        %p501 = pneg %p119
        %p502 = pneg %p116
        %p503 = pneg %p140
        %p504 = pneg %p137
        %p505 = pneg %p161
        %p506 = pneg %p158
        %p507 = pneg %p182
        %p508 = pneg %p179
        %p509 = pneg %p203
        %p510 = pneg %p200
        %p511 = pneg %p224
        %p512 = pneg %p221
        %p513 = pneg %p245
        %p514 = pneg %p242
        %p515 = pneg %p266
        %p516 = pneg %p263
        %p517 = pneg %p292
        %p518 = pneg %p289
        %s519 = sand.u32 %s279, 1
        %s520 = scalar_lea.sflag [#allocation5], %s519
        %s521 = sand.u32 %s279, 1
        %s522 = smul.addr %s521, 2
        %s523 = scalar_lea.vmem [#allocation20], %s522
        %s524 = smul.u32 2, %s35
        %v526 = vld [vmem:[%s449] sm:$0xf]
        %v527 = vld [vmem:[#allocation6] sm:$0xf]
        %v528 = vld [vmem:[#allocation8] sm:$0x1]
        %v530 = vlaneseq
        %v531 = vshrl.u32 %v530, 7
        %v532 = vsub.s32 0, %v531
        %v533 = vrot.slane %v528, %v532
        %535 = vxpose.xlu0.c.b16.start [1/8] %v526, 128
        %536 = vxpose.xlu0.c.b16.cont [2/8] 0, 128
        %537 = vxpose.xlu0.c.b16.cont [3/8] 0, 128
        %538 = vxpose.xlu0.c.b16.cont [4/8] 0, 128
        %539 = vxpose.xlu0.c.b16.cont [5/8] 0, 128
        %540 = vxpose.xlu0.c.b16.cont [6/8] 0, 128
        %541 = vxpose.xlu0.c.b16.cont [7/8] 0, 128
        %542 = vxpose.xlu0.c.b16.end [8/8] 0, 128
        %v543 = vpop.trf.xlu0
        %v544 = vpop.trf.xlu0
        %v545 = vpop.trf.xlu0
        %v546 = vpop.trf.xlu0
        %v547 = vpop.trf.xlu0
        %v548 = vpop.trf.xlu0
        %v549 = vpop.trf.xlu0
        %v550 = vpop.trf.xlu0
        %vm551 = vcmask 64512
        %v553 = vsel %vm551, %v543, 0
        %v556 = vsel %vm551, %v544, 0
        %v559 = vsel %vm551, %v545, 0
        %v562 = vsel %vm551, %v546, 0
        %v565 = vsel %vm551, %v547, 0
        %v568 = vsel %vm551, %v548, 0
        %v571 = vsel %vm551, %v549, 0
        %v574 = vsel %vm551, %v550, 0
        %vm576 = vcmask 1043456
        %v578 = vsel %vm576, %v527, 0
        %580 = vmatprep.subr.bf16.mxu0 0
        %581 = vmatpush1.bf16.msra.mxu0 %v578
        %582 = vmatprep.subr.bf16.mxu0 0
        %583 = vmatpush1.bf16.msra.mxu0 0
        %584 = vmatprep.subr.bf16.mxu0 0
        %585 = vmatpush1.bf16.msra.mxu0 0
        %586 = vmatprep.subr.bf16.mxu0 0
        %587 = vmatpush1.bf16.msra.mxu0 0
        %588 = vmatprep.subr.bf16.mxu0 0
        %589 = vmatpush1.bf16.msra.mxu0 0
        %590 = vmatprep.subr.bf16.mxu0 0
        %591 = vmatpush1.bf16.msra.mxu0 0
        %592 = vmatprep.subr.bf16.mxu0 0
        %593 = vmatpush1.bf16.msra.mxu0 0
        %594 = vmatprep.subr.bf16.mxu0 0
        %595 = vmatpush1.bf16.msra.mxu0 0
        %596 = vmatprep.subr.bf16.mxu0 0
        %597 = vmatpush1.bf16.msra.mxu0 0
        %598 = vmatprep.subr.bf16.mxu0 0
        %599 = vmatpush1.bf16.msra.mxu0 0
        %600 = vmatprep.subr.bf16.mxu0 0
        %601 = vmatpush1.bf16.msra.mxu0 0
        %602 = vmatprep.subr.bf16.mxu0 0
        %603 = vmatpush1.bf16.msra.mxu0 0
        %604 = vmatprep.subr.bf16.mxu0 0
        %605 = vmatpush1.bf16.msra.mxu0 0
        %606 = vmatprep.subr.bf16.mxu0 0
        %607 = vmatpush1.bf16.msra.mxu0 0
        %608 = vmatprep.subr.bf16.mxu0 0
        %609 = vmatpush1.bf16.msra.mxu0 0
        %610 = vmatprep.subr.bf16.mxu0 0
        %611 = vmatpush1.bf16.msra.mxu0 0
        %612 = vmatprep.mubr.bf16.mxu0 0
        %613 = vmatmul.mubr.bf16.gmra.mrb[0].mxu0 %v553
        %v614 = vpop.f32.mrb[0].mxu0
        %v615 = vadd.f32 %v533, %v614
        %v616 = vpop.f32.mrb[0].mxu0
        %v617 = vpop.f32.mrb[0].mxu0
        %v618 = vadd.f32 %v533, %v617
        %v619 = vpop.f32.mrb[0].mxu0
        %620 = vmatprep.mubr.bf16.mxu0 0
        %621 = vmatmul.mubr.bf16.gmra.mrb[0].mxu0 %v556
        %v622 = vpop.f32.mrb[0].mxu0
        %v623 = vadd.f32 %v533, %v622
        %v624 = vpop.f32.mrb[0].mxu0
        %v625 = vpop.f32.mrb[0].mxu0
        %v626 = vadd.f32 %v533, %v625
        %v627 = vpop.f32.mrb[0].mxu0
        %628 = vmatprep.mubr.bf16.mxu0 0
        %629 = vmatmul.mubr.bf16.gmra.mrb[0].mxu0 %v559
        %v630 = vpop.f32.mrb[0].mxu0
        %v631 = vadd.f32 %v533, %v630
        %v632 = vpop.f32.mrb[0].mxu0
        %v633 = vpop.f32.mrb[0].mxu0
        %v634 = vadd.f32 %v533, %v633
        %v635 = vpop.f32.mrb[0].mxu0
        %636 = vmatprep.mubr.bf16.mxu0 0
        %637 = vmatmul.mubr.bf16.gmra.mrb[0].mxu0 %v562
        %v638 = vpop.f32.mrb[0].mxu0
        %v639 = vadd.f32 %v533, %v638
        %v640 = vpop.f32.mrb[0].mxu0
        %v641 = vpop.f32.mrb[0].mxu0
        %v642 = vadd.f32 %v533, %v641
        %v643 = vpop.f32.mrb[0].mxu0
        %644 = vmatprep.mubr.bf16.mxu0 0
        %645 = vmatmul.mubr.bf16.gmra.mrb[0].mxu0 %v565
        %v646 = vpop.f32.mrb[0].mxu0
        %v647 = vadd.f32 %v533, %v646
        %v648 = vpop.f32.mrb[0].mxu0
        %v649 = vpop.f32.mrb[0].mxu0
        %v650 = vadd.f32 %v533, %v649
        %v651 = vpop.f32.mrb[0].mxu0
        %652 = vmatprep.mubr.bf16.mxu0 0
        %653 = vmatmul.mubr.bf16.gmra.mrb[0].mxu0 %v568
        %v654 = vpop.f32.mrb[0].mxu0
        %v655 = vadd.f32 %v533, %v654
        %v656 = vpop.f32.mrb[0].mxu0
        %v657 = vpop.f32.mrb[0].mxu0
        %v658 = vadd.f32 %v533, %v657
        %v659 = vpop.f32.mrb[0].mxu0
        %660 = vmatprep.mubr.bf16.mxu0 0
        %661 = vmatmul.mubr.bf16.gmra.mrb[0].mxu0 %v571
        %v662 = vpop.f32.mrb[0].mxu0
        %v663 = vadd.f32 %v533, %v662
        %v664 = vpop.f32.mrb[0].mxu0
        %v665 = vpop.f32.mrb[0].mxu0
        %v666 = vadd.f32 %v533, %v665
        %v667 = vpop.f32.mrb[0].mxu0
        %668 = vmatprep.mubr.bf16.mxu0 0
        %669 = vmatmul.mubr.bf16.gmra.mrb[0].mxu0 %v574
        %v670 = vpop.f32.mrb[0].mxu0
        %v671 = vadd.f32 %v533, %v670
        %v672 = vpop.f32.mrb[0].mxu0
        %v673 = vpop.f32.mrb[0].mxu0
        %v674 = vadd.f32 %v533, %v673
        %v675 = vpop.f32.mrb[0].mxu0
        %676 = vdwg.mxu0
        %v677 = vmax.f32 %v615, 0.0
        %v678 = vmax.f32 %v618, 0.0
        %v679 = vmax.f32 %v623, 0.0
        %v680 = vmax.f32 %v626, 0.0
        %v681 = vmax.f32 %v631, 0.0
        %v682 = vmax.f32 %v634, 0.0
        %v683 = vmax.f32 %v639, 0.0
        %v684 = vmax.f32 %v642, 0.0
        %v685 = vmax.f32 %v647, 0.0
        %v686 = vmax.f32 %v650, 0.0
        %v687 = vmax.f32 %v655, 0.0
        %v688 = vmax.f32 %v658, 0.0
        %v689 = vmax.f32 %v663, 0.0
        %v690 = vmax.f32 %v666, 0.0
        %v691 = vmax.f32 %v671, 0.0
        %v692 = vmax.f32 %v674, 0.0
        %v693 = vpack.c.bf16 %v678, %v677
        %v694 = vpack.c.bf16 %v680, %v679
        %v695 = vpack.c.bf16 %v682, %v681
        %v696 = vpack.c.bf16 %v684, %v683
        %v697 = vpack.c.bf16 %v686, %v685
        %v698 = vpack.c.bf16 %v688, %v687
        %v699 = vpack.c.bf16 %v690, %v689
        %v700 = vpack.c.bf16 %v692, %v691
        %v701 = vld [vmem:[#allocation9] sm:$0xf]
        %v702 = vld [vmem:[#allocation9 + $0x4] sm:$0xf]
        %v703 = vld [vmem:[#allocation9 + $0x8] sm:$0xf]
        %v704 = vld [vmem:[#allocation9 + $0xc] sm:$0xf]
        %v705 = vld [vmem:[#allocation9 + $0x10] sm:$0xf]
        %v706 = vld [vmem:[#allocation9 + $0x14] sm:$0xf]
        %v707 = vld [vmem:[#allocation9 + $0x18] sm:$0xf]
        %v708 = vld [vmem:[#allocation9 + $0x1c] sm:$0xf]
        %v709 = vld [vmem:[#allocation9 + $0x20] sm:$0xf]
        %v710 = vld [vmem:[#allocation9 + $0x24] sm:$0xf]
        %v711 = vld [vmem:[#allocation9 + $0x28] sm:$0xf]
        %v712 = vld [vmem:[#allocation9 + $0x2c] sm:$0xf]
        %v713 = vld [vmem:[#allocation9 + $0x30] sm:$0xf]
        %v714 = vld [vmem:[#allocation9 + $0x34] sm:$0xf]
        %v715 = vld [vmem:[#allocation9 + $0x38] sm:$0xf]
        %v716 = vld [vmem:[#allocation9 + $0x3c] sm:$0xf]
        %v717 = vld [vmem:[#allocation11] sm:$0x1]
        %v719 = vlaneseq
        %v720 = vshrl.u32 %v719, 7
        %v721 = vsub.s32 0, %v720
        %v722 = vrot.slane %v717, %v721
        %v740 = vunpack.c.l.b16 %v701
        %v741 = vunpack.c.l.b16 %v702
        %v742 = vunpack.c.l.b16 %v703
        %v743 = vunpack.c.l.b16 %v704
        %v744 = vunpack.c.l.b16 %v705
        %v745 = vunpack.c.l.b16 %v706
        %v746 = vunpack.c.l.b16 %v707
        %v747 = vunpack.c.l.b16 %v708
        %v748 = vunpack.c.l.b16 %v709
        %v749 = vunpack.c.l.b16 %v710
        %v750 = vunpack.c.l.b16 %v711
        %v751 = vunpack.c.l.b16 %v712
        %v752 = vunpack.c.l.b16 %v713
        %v753 = vunpack.c.l.b16 %v714
        %v754 = vunpack.c.l.b16 %v715
        %v755 = vunpack.c.l.b16 %v716
        %v756 = vpack.c.b16 %v741, %v740
        %v757 = vpack.c.b16 %v743, %v742
        %v758 = vpack.c.b16 %v745, %v744
        %v759 = vpack.c.b16 %v747, %v746
        %v760 = vpack.c.b16 %v749, %v748
        %v761 = vpack.c.b16 %v751, %v750
        %v762 = vpack.c.b16 %v753, %v752
        %v763 = vpack.c.b16 %v755, %v754
        %772 = vmatprep.subr.bf16.mxu0 0
        %773 = vmatpush1.bf16.msra.mxu0 %v756
        %774 = vmatprep.subr.bf16.mxu0 0
        %775 = vmatpush1.bf16.msra.mxu0 %v757
        %776 = vmatprep.subr.bf16.mxu0 0
        %777 = vmatpush1.bf16.msra.mxu0 %v758
        %778 = vmatprep.subr.bf16.mxu0 0
        %779 = vmatpush1.bf16.msra.mxu0 %v759
        %780 = vmatprep.subr.bf16.mxu0 0
        %781 = vmatpush1.bf16.msra.mxu0 %v760
        %782 = vmatprep.subr.bf16.mxu0 0
        %783 = vmatpush1.bf16.msra.mxu0 %v761
        %784 = vmatprep.subr.bf16.mxu0 0
        %785 = vmatpush1.bf16.msra.mxu0 %v762
        %786 = vmatprep.subr.bf16.mxu0 0
        %787 = vmatpush1.bf16.msra.mxu0 %v763
        %788 = vmatprep.subr.bf16.mxu0 0
        %789 = vmatpush1.bf16.msra.mxu0 0
        %790 = vmatprep.subr.bf16.mxu0 0
        %791 = vmatpush1.bf16.msra.mxu0 0
        %792 = vmatprep.subr.bf16.mxu0 0
        %793 = vmatpush1.bf16.msra.mxu0 0
        %794 = vmatprep.subr.bf16.mxu0 0
        %795 = vmatpush1.bf16.msra.mxu0 0
        %796 = vmatprep.subr.bf16.mxu0 0
        %797 = vmatpush1.bf16.msra.mxu0 0
        %798 = vmatprep.subr.bf16.mxu0 0
        %799 = vmatpush1.bf16.msra.mxu0 0
        %800 = vmatprep.subr.bf16.mxu0 0
        %801 = vmatpush1.bf16.msra.mxu0 0
        %802 = vmatprep.subr.bf16.mxu0 0
        %803 = vmatpush1.bf16.msra.mxu0 0
        %804 = vmatprep.mubr.bf16.mxu0 0
        %805 = vmatmul.mubr.bf16.gmra.mrb[0].mxu0 %v693
        %v806 = vpop.f32.mrb[0].mxu0
        %v807 = vadd.f32 %v722, %v806
        %v808 = vpop.f32.mrb[0].mxu0
        %v809 = vpop.f32.mrb[0].mxu0
        %v810 = vadd.f32 %v722, %v809
        %v811 = vpop.f32.mrb[0].mxu0
        %812 = vmatprep.mubr.bf16.mxu0 0
        %813 = vmatmul.mubr.bf16.gmra.mrb[0].mxu0 %v694
        %v814 = vpop.f32.mrb[0].mxu0
        %v815 = vadd.f32 %v722, %v814
        %v816 = vpop.f32.mrb[0].mxu0
        %v817 = vpop.f32.mrb[0].mxu0
        %v818 = vadd.f32 %v722, %v817
        %v819 = vpop.f32.mrb[0].mxu0
        %820 = vmatprep.mubr.bf16.mxu0 0
        %821 = vmatmul.mubr.bf16.gmra.mrb[0].mxu0 %v695
        %v822 = vpop.f32.mrb[0].mxu0
        %v823 = vadd.f32 %v722, %v822
        %v824 = vpop.f32.mrb[0].mxu0
        %v825 = vpop.f32.mrb[0].mxu0
        %v826 = vadd.f32 %v722, %v825
        %v827 = vpop.f32.mrb[0].mxu0
        %828 = vmatprep.mubr.bf16.mxu0 0
        %829 = vmatmul.mubr.bf16.gmra.mrb[0].mxu0 %v696
        %v830 = vpop.f32.mrb[0].mxu0
        %v831 = vadd.f32 %v722, %v830
        %v832 = vpop.f32.mrb[0].mxu0
        %v833 = vpop.f32.mrb[0].mxu0
        %v834 = vadd.f32 %v722, %v833
        %v835 = vpop.f32.mrb[0].mxu0
        %836 = vmatprep.mubr.bf16.mxu0 0
        %837 = vmatmul.mubr.bf16.gmra.mrb[0].mxu0 %v697
        %v838 = vpop.f32.mrb[0].mxu0
        %v839 = vadd.f32 %v722, %v838
        %v840 = vpop.f32.mrb[0].mxu0
        %v841 = vpop.f32.mrb[0].mxu0
        %v842 = vadd.f32 %v722, %v841
        %v843 = vpop.f32.mrb[0].mxu0
        %844 = vmatprep.mubr.bf16.mxu0 0
        %845 = vmatmul.mubr.bf16.gmra.mrb[0].mxu0 %v698
        %v846 = vpop.f32.mrb[0].mxu0
        %v847 = vadd.f32 %v722, %v846
        %v848 = vpop.f32.mrb[0].mxu0
        %v849 = vpop.f32.mrb[0].mxu0
        %v850 = vadd.f32 %v722, %v849
        %v851 = vpop.f32.mrb[0].mxu0
        %852 = vmatprep.mubr.bf16.mxu0 0
        %853 = vmatmul.mubr.bf16.gmra.mrb[0].mxu0 %v699
        %v854 = vpop.f32.mrb[0].mxu0
        %v855 = vadd.f32 %v722, %v854
        %v856 = vpop.f32.mrb[0].mxu0
        %v857 = vpop.f32.mrb[0].mxu0
        %v858 = vadd.f32 %v722, %v857
        %v859 = vpop.f32.mrb[0].mxu0
        %860 = vmatprep.mubr.bf16.mxu0 0
        %861 = vmatmul.mubr.bf16.gmra.mrb[0].mxu0 %v700
        %v862 = vpop.f32.mrb[0].mxu0
        %v863 = vadd.f32 %v722, %v862
        %v864 = vpop.f32.mrb[0].mxu0
        %v865 = vpop.f32.mrb[0].mxu0
        %v866 = vadd.f32 %v722, %v865
        %v867 = vpop.f32.mrb[0].mxu0
        %868 = vdwg.mxu0
        %v869 = vmax.f32 %v807, 0.0
        %v870 = vmax.f32 %v810, 0.0
        %v871 = vmax.f32 %v815, 0.0
        %v872 = vmax.f32 %v818, 0.0
        %v873 = vmax.f32 %v823, 0.0
        %v874 = vmax.f32 %v826, 0.0
        %v875 = vmax.f32 %v831, 0.0
        %v876 = vmax.f32 %v834, 0.0
        %v877 = vmax.f32 %v839, 0.0
        %v878 = vmax.f32 %v842, 0.0
        %v879 = vmax.f32 %v847, 0.0
        %v880 = vmax.f32 %v850, 0.0
        %v881 = vmax.f32 %v855, 0.0
        %v882 = vmax.f32 %v858, 0.0
        %v883 = vmax.f32 %v863, 0.0
        %v884 = vmax.f32 %v866, 0.0
        %v885 = vpack.c.bf16 %v870, %v869
        %v886 = vpack.c.bf16 %v872, %v871
        %v887 = vpack.c.bf16 %v874, %v873
        %v888 = vpack.c.bf16 %v876, %v875
        %v889 = vpack.c.bf16 %v878, %v877
        %v890 = vpack.c.bf16 %v880, %v879
        %v891 = vpack.c.bf16 %v882, %v881
        %v892 = vpack.c.bf16 %v884, %v883
        %v893 = vld [vmem:[#allocation12] sm:$0xf]
        %v894 = vld [vmem:[#allocation12 + $0x4] sm:$0xf]
        %v895 = vld [vmem:[#allocation12 + $0x8] sm:$0xf]
        %v896 = vld [vmem:[#allocation12 + $0xc] sm:$0xf]
        %v897 = vld [vmem:[#allocation12 + $0x10] sm:$0xf]
        %v898 = vld [vmem:[#allocation12 + $0x14] sm:$0xf]
        %v899 = vld [vmem:[#allocation12 + $0x18] sm:$0xf]
        %v900 = vld [vmem:[#allocation12 + $0x1c] sm:$0xf]
        %v901 = vld [vmem:[#allocation12 + $0x20] sm:$0xf]
        %v902 = vld [vmem:[#allocation12 + $0x24] sm:$0xf]
        %v903 = vld [vmem:[#allocation12 + $0x28] sm:$0xf]
        %v904 = vld [vmem:[#allocation12 + $0x2c] sm:$0xf]
        %v905 = vld [vmem:[#allocation12 + $0x30] sm:$0xf]
        %v906 = vld [vmem:[#allocation12 + $0x34] sm:$0xf]
        %v907 = vld [vmem:[#allocation12 + $0x38] sm:$0xf]
        %v908 = vld [vmem:[#allocation12 + $0x3c] sm:$0xf]
        %v909 = vld [vmem:[#allocation14] sm:$0x1]
        %v911 = vlaneseq
        %v912 = vshrl.u32 %v911, 7
        %v913 = vsub.s32 0, %v912
        %v914 = vrot.slane %v909, %v913
        %v932 = vunpack.c.l.b16 %v893
        %v933 = vunpack.c.l.b16 %v894
        %v934 = vunpack.c.l.b16 %v895
        %v935 = vunpack.c.l.b16 %v896
        %v936 = vunpack.c.l.b16 %v897
        %v937 = vunpack.c.l.b16 %v898
        %v938 = vunpack.c.l.b16 %v899
        %v939 = vunpack.c.l.b16 %v900
        %v940 = vunpack.c.l.b16 %v901
        %v941 = vunpack.c.l.b16 %v902
        %v942 = vunpack.c.l.b16 %v903
        %v943 = vunpack.c.l.b16 %v904
        %v944 = vunpack.c.l.b16 %v905
        %v945 = vunpack.c.l.b16 %v906
        %v946 = vunpack.c.l.b16 %v907
        %v947 = vunpack.c.l.b16 %v908
        %v948 = vpack.c.b16 %v933, %v932
        %v949 = vpack.c.b16 %v935, %v934
        %v950 = vpack.c.b16 %v937, %v936
        %v951 = vpack.c.b16 %v939, %v938
        %v952 = vpack.c.b16 %v941, %v940
        %v953 = vpack.c.b16 %v943, %v942
        %v954 = vpack.c.b16 %v945, %v944
        %v955 = vpack.c.b16 %v947, %v946
        %964 = vmatprep.subr.bf16.mxu0 0
        %965 = vmatpush1.bf16.msra.mxu0 %v948
        %966 = vmatprep.subr.bf16.mxu0 0
        %967 = vmatpush1.bf16.msra.mxu0 %v949
        %968 = vmatprep.subr.bf16.mxu0 0
        %969 = vmatpush1.bf16.msra.mxu0 %v950
        %970 = vmatprep.subr.bf16.mxu0 0
        %971 = vmatpush1.bf16.msra.mxu0 %v951
        %972 = vmatprep.subr.bf16.mxu0 0
        %973 = vmatpush1.bf16.msra.mxu0 %v952
        %974 = vmatprep.subr.bf16.mxu0 0
        %975 = vmatpush1.bf16.msra.mxu0 %v953
        %976 = vmatprep.subr.bf16.mxu0 0
        %977 = vmatpush1.bf16.msra.mxu0 %v954
        %978 = vmatprep.subr.bf16.mxu0 0
        %979 = vmatpush1.bf16.msra.mxu0 %v955
        %980 = vmatprep.subr.bf16.mxu0 0
        %981 = vmatpush1.bf16.msra.mxu0 0
        %982 = vmatprep.subr.bf16.mxu0 0
        %983 = vmatpush1.bf16.msra.mxu0 0
        %984 = vmatprep.subr.bf16.mxu0 0
        %985 = vmatpush1.bf16.msra.mxu0 0
        %986 = vmatprep.subr.bf16.mxu0 0
        %987 = vmatpush1.bf16.msra.mxu0 0
        %988 = vmatprep.subr.bf16.mxu0 0
        %989 = vmatpush1.bf16.msra.mxu0 0
        %990 = vmatprep.subr.bf16.mxu0 0
        %991 = vmatpush1.bf16.msra.mxu0 0
        %992 = vmatprep.subr.bf16.mxu0 0
        %993 = vmatpush1.bf16.msra.mxu0 0
        %994 = vmatprep.subr.bf16.mxu0 0
        %995 = vmatpush1.bf16.msra.mxu0 0
        %996 = vmatprep.mubr.bf16.mxu0 0
        %997 = vmatmul.mubr.bf16.gmra.mrb[0].mxu0 %v885
        %v998 = vpop.f32.mrb[0].mxu0
        %v999 = vadd.f32 %v914, %v998
        %v1000 = vpop.f32.mrb[0].mxu0
        %v1001 = vpop.f32.mrb[0].mxu0
        %v1002 = vadd.f32 %v914, %v1001
        %v1003 = vpop.f32.mrb[0].mxu0
        %1004 = vmatprep.mubr.bf16.mxu0 0
        %1005 = vmatmul.mubr.bf16.gmra.mrb[0].mxu0 %v886
        %v1006 = vpop.f32.mrb[0].mxu0
        %v1007 = vadd.f32 %v914, %v1006
        %v1008 = vpop.f32.mrb[0].mxu0
        %v1009 = vpop.f32.mrb[0].mxu0
        %v1010 = vadd.f32 %v914, %v1009
        %v1011 = vpop.f32.mrb[0].mxu0
        %1012 = vmatprep.mubr.bf16.mxu0 0
        %1013 = vmatmul.mubr.bf16.gmra.mrb[0].mxu0 %v887
        %v1014 = vpop.f32.mrb[0].mxu0
        %v1015 = vadd.f32 %v914, %v1014
        %v1016 = vpop.f32.mrb[0].mxu0
        %v1017 = vpop.f32.mrb[0].mxu0
        %v1018 = vadd.f32 %v914, %v1017
        %v1019 = vpop.f32.mrb[0].mxu0
        %1020 = vmatprep.mubr.bf16.mxu0 0
        %1021 = vmatmul.mubr.bf16.gmra.mrb[0].mxu0 %v888
        %v1022 = vpop.f32.mrb[0].mxu0
        %v1023 = vadd.f32 %v914, %v1022
        %v1024 = vpop.f32.mrb[0].mxu0
        %v1025 = vpop.f32.mrb[0].mxu0
        %v1026 = vadd.f32 %v914, %v1025
        %v1027 = vpop.f32.mrb[0].mxu0
        %1028 = vmatprep.mubr.bf16.mxu0 0
        %1029 = vmatmul.mubr.bf16.gmra.mrb[0].mxu0 %v889
        %v1030 = vpop.f32.mrb[0].mxu0
        %v1031 = vadd.f32 %v914, %v1030
        %v1032 = vpop.f32.mrb[0].mxu0
        %v1033 = vpop.f32.mrb[0].mxu0
        %v1034 = vadd.f32 %v914, %v1033
        %v1035 = vpop.f32.mrb[0].mxu0
        %1036 = vmatprep.mubr.bf16.mxu0 0
        %1037 = vmatmul.mubr.bf16.gmra.mrb[0].mxu0 %v890
        %v1038 = vpop.f32.mrb[0].mxu0
        %v1039 = vadd.f32 %v914, %v1038
        %v1040 = vpop.f32.mrb[0].mxu0
        %v1041 = vpop.f32.mrb[0].mxu0
        %v1042 = vadd.f32 %v914, %v1041
        %v1043 = vpop.f32.mrb[0].mxu0
        %1044 = vmatprep.mubr.bf16.mxu0 0
        %1045 = vmatmul.mubr.bf16.gmra.mrb[0].mxu0 %v891
        %v1046 = vpop.f32.mrb[0].mxu0
        %v1047 = vadd.f32 %v914, %v1046
        %v1048 = vpop.f32.mrb[0].mxu0
        %v1049 = vpop.f32.mrb[0].mxu0
        %v1050 = vadd.f32 %v914, %v1049
        %v1051 = vpop.f32.mrb[0].mxu0
        %1052 = vmatprep.mubr.bf16.mxu0 0
        %1053 = vmatmul.mubr.bf16.gmra.mrb[0].mxu0 %v892
        %v1054 = vpop.f32.mrb[0].mxu0
        %v1055 = vadd.f32 %v914, %v1054
        %v1056 = vpop.f32.mrb[0].mxu0
        %v1057 = vpop.f32.mrb[0].mxu0
        %v1058 = vadd.f32 %v914, %v1057
        %v1059 = vpop.f32.mrb[0].mxu0
        %1060 = vdwg.mxu0
        %v1061 = vmax.f32 %v999, 0.0
        %v1062 = vmax.f32 %v1002, 0.0
        %v1063 = vmax.f32 %v1007, 0.0
        %v1064 = vmax.f32 %v1010, 0.0
        %v1065 = vmax.f32 %v1015, 0.0
        %v1066 = vmax.f32 %v1018, 0.0
        %v1067 = vmax.f32 %v1023, 0.0
        %v1068 = vmax.f32 %v1026, 0.0
        %v1069 = vmax.f32 %v1031, 0.0
        %v1070 = vmax.f32 %v1034, 0.0
        %v1071 = vmax.f32 %v1039, 0.0
        %v1072 = vmax.f32 %v1042, 0.0
        %v1073 = vmax.f32 %v1047, 0.0
        %v1074 = vmax.f32 %v1050, 0.0
        %v1075 = vmax.f32 %v1055, 0.0
        %v1076 = vmax.f32 %v1058, 0.0
        %v1077 = vpack.c.bf16 %v1062, %v1061
        %v1078 = vpack.c.bf16 %v1064, %v1063
        %v1079 = vpack.c.bf16 %v1066, %v1065
        %v1080 = vpack.c.bf16 %v1068, %v1067
        %v1081 = vpack.c.bf16 %v1070, %v1069
        %v1082 = vpack.c.bf16 %v1072, %v1071
        %v1083 = vpack.c.bf16 %v1074, %v1073
        %v1084 = vpack.c.bf16 %v1076, %v1075
        %v1085 = vld [vmem:[#allocation15] sm:$0xf]
        %v1086 = vld [vmem:[#allocation15 + $0x4] sm:$0xf]
        %v1087 = vld [vmem:[#allocation15 + $0x8] sm:$0xf]
        %v1088 = vld [vmem:[#allocation15 + $0xc] sm:$0xf]
        %v1089 = vld [vmem:[#allocation15 + $0x10] sm:$0xf]
        %v1090 = vld [vmem:[#allocation15 + $0x14] sm:$0xf]
        %v1091 = vld [vmem:[#allocation15 + $0x18] sm:$0xf]
        %v1092 = vld [vmem:[#allocation15 + $0x1c] sm:$0xf]
        %v1093 = vld [vmem:[#allocation15 + $0x20] sm:$0xf]
        %v1094 = vld [vmem:[#allocation15 + $0x24] sm:$0xf]
        %v1095 = vld [vmem:[#allocation15 + $0x28] sm:$0xf]
        %v1096 = vld [vmem:[#allocation15 + $0x2c] sm:$0xf]
        %v1097 = vld [vmem:[#allocation15 + $0x30] sm:$0xf]
        %v1098 = vld [vmem:[#allocation15 + $0x34] sm:$0xf]
        %v1099 = vld [vmem:[#allocation15 + $0x38] sm:$0xf]
        %v1100 = vld [vmem:[#allocation15 + $0x3c] sm:$0xf]
        %v1101 = vld [vmem:[#allocation17] sm:$0x1]
        %v1103 = vlaneseq
        %v1104 = vshrl.u32 %v1103, 7
        %v1105 = vsub.s32 0, %v1104
        %v1106 = vrot.slane %v1101, %v1105
        %v1124 = vunpack.c.l.b16 %v1085
        %v1125 = vunpack.c.l.b16 %v1086
        %v1126 = vunpack.c.l.b16 %v1087
        %v1127 = vunpack.c.l.b16 %v1088
        %v1128 = vunpack.c.l.b16 %v1089
        %v1129 = vunpack.c.l.b16 %v1090
        %v1130 = vunpack.c.l.b16 %v1091
        %v1131 = vunpack.c.l.b16 %v1092
        %v1132 = vunpack.c.l.b16 %v1093
        %v1133 = vunpack.c.l.b16 %v1094
        %v1134 = vunpack.c.l.b16 %v1095
        %v1135 = vunpack.c.l.b16 %v1096
        %v1136 = vunpack.c.l.b16 %v1097
        %v1137 = vunpack.c.l.b16 %v1098
        %v1138 = vunpack.c.l.b16 %v1099
        %v1139 = vunpack.c.l.b16 %v1100
        %v1140 = vpack.c.b16 %v1125, %v1124
        %v1141 = vpack.c.b16 %v1127, %v1126
        %v1142 = vpack.c.b16 %v1129, %v1128
        %v1143 = vpack.c.b16 %v1131, %v1130
        %v1144 = vpack.c.b16 %v1133, %v1132
        %v1145 = vpack.c.b16 %v1135, %v1134
        %v1146 = vpack.c.b16 %v1137, %v1136
        %v1147 = vpack.c.b16 %v1139, %v1138
        %1156 = vmatprep.subr.bf16.mxu0 0
        %1157 = vmatpush1.bf16.msra.mxu0 %v1140
        %1158 = vmatprep.subr.bf16.mxu0 0
        %1159 = vmatpush1.bf16.msra.mxu0 %v1141
        %1160 = vmatprep.subr.bf16.mxu0 0
        %1161 = vmatpush1.bf16.msra.mxu0 %v1142
        %1162 = vmatprep.subr.bf16.mxu0 0
        %1163 = vmatpush1.bf16.msra.mxu0 %v1143
        %1164 = vmatprep.subr.bf16.mxu0 0
        %1165 = vmatpush1.bf16.msra.mxu0 %v1144
        %1166 = vmatprep.subr.bf16.mxu0 0
        %1167 = vmatpush1.bf16.msra.mxu0 %v1145
        %1168 = vmatprep.subr.bf16.mxu0 0
        %1169 = vmatpush1.bf16.msra.mxu0 %v1146
        %1170 = vmatprep.subr.bf16.mxu0 0
        %1171 = vmatpush1.bf16.msra.mxu0 %v1147
        %1172 = vmatprep.subr.bf16.mxu0 0
        %1173 = vmatpush1.bf16.msra.mxu0 0
        %1174 = vmatprep.subr.bf16.mxu0 0
        %1175 = vmatpush1.bf16.msra.mxu0 0
        %1176 = vmatprep.subr.bf16.mxu0 0
        %1177 = vmatpush1.bf16.msra.mxu0 0
        %1178 = vmatprep.subr.bf16.mxu0 0
        %1179 = vmatpush1.bf16.msra.mxu0 0
        %1180 = vmatprep.subr.bf16.mxu0 0
        %1181 = vmatpush1.bf16.msra.mxu0 0
        %1182 = vmatprep.subr.bf16.mxu0 0
        %1183 = vmatpush1.bf16.msra.mxu0 0
        %1184 = vmatprep.subr.bf16.mxu0 0
        %1185 = vmatpush1.bf16.msra.mxu0 0
        %1186 = vmatprep.subr.bf16.mxu0 0
        %1187 = vmatpush1.bf16.msra.mxu0 0
        %1188 = vmatprep.mubr.bf16.mxu0 0
        %1189 = vmatmul.mubr.bf16.gmra.mrb[0].mxu0 %v1077
        %v1190 = vpop.f32.mrb[0].mxu0
        %v1191 = vadd.f32 %v1106, %v1190
        %v1192 = vpop.f32.mrb[0].mxu0
        %v1193 = vpop.f32.mrb[0].mxu0
        %v1194 = vadd.f32 %v1106, %v1193
        %v1195 = vpop.f32.mrb[0].mxu0
        %1196 = vmatprep.mubr.bf16.mxu0 0
        %1197 = vmatmul.mubr.bf16.gmra.mrb[0].mxu0 %v1078
        %v1198 = vpop.f32.mrb[0].mxu0
        %v1199 = vadd.f32 %v1106, %v1198
        %v1200 = vpop.f32.mrb[0].mxu0
        %v1201 = vpop.f32.mrb[0].mxu0
        %v1202 = vadd.f32 %v1106, %v1201
        %v1203 = vpop.f32.mrb[0].mxu0
        %1204 = vmatprep.mubr.bf16.mxu0 0
        %1205 = vmatmul.mubr.bf16.gmra.mrb[0].mxu0 %v1079
        %v1206 = vpop.f32.mrb[0].mxu0
        %v1207 = vadd.f32 %v1106, %v1206
        %v1208 = vpop.f32.mrb[0].mxu0
        %v1209 = vpop.f32.mrb[0].mxu0
        %v1210 = vadd.f32 %v1106, %v1209
        %v1211 = vpop.f32.mrb[0].mxu0
        %1212 = vmatprep.mubr.bf16.mxu0 0
        %1213 = vmatmul.mubr.bf16.gmra.mrb[0].mxu0 %v1080
        %v1214 = vpop.f32.mrb[0].mxu0
        %v1215 = vadd.f32 %v1106, %v1214
        %v1216 = vpop.f32.mrb[0].mxu0
        %v1217 = vpop.f32.mrb[0].mxu0
        %v1218 = vadd.f32 %v1106, %v1217
        %v1219 = vpop.f32.mrb[0].mxu0
        %1220 = vmatprep.mubr.bf16.mxu0 0
        %1221 = vmatmul.mubr.bf16.gmra.mrb[0].mxu0 %v1081
        %v1222 = vpop.f32.mrb[0].mxu0
        %v1223 = vadd.f32 %v1106, %v1222
        %v1224 = vpop.f32.mrb[0].mxu0
        %v1225 = vpop.f32.mrb[0].mxu0
        %v1226 = vadd.f32 %v1106, %v1225
        %v1227 = vpop.f32.mrb[0].mxu0
        %1228 = vmatprep.mubr.bf16.mxu0 0
        %1229 = vmatmul.mubr.bf16.gmra.mrb[0].mxu0 %v1082
        %v1230 = vpop.f32.mrb[0].mxu0
        %v1231 = vadd.f32 %v1106, %v1230
        %v1232 = vpop.f32.mrb[0].mxu0
        %v1233 = vpop.f32.mrb[0].mxu0
        %v1234 = vadd.f32 %v1106, %v1233
        %v1235 = vpop.f32.mrb[0].mxu0
        %1236 = vmatprep.mubr.bf16.mxu0 0
        %1237 = vmatmul.mubr.bf16.gmra.mrb[0].mxu0 %v1083
        %v1238 = vpop.f32.mrb[0].mxu0
        %v1239 = vadd.f32 %v1106, %v1238
        %v1240 = vpop.f32.mrb[0].mxu0
        %v1241 = vpop.f32.mrb[0].mxu0
        %v1242 = vadd.f32 %v1106, %v1241
        %v1243 = vpop.f32.mrb[0].mxu0
        %1244 = vmatprep.mubr.bf16.mxu0 0
        %1245 = vmatmul.mubr.bf16.gmra.mrb[0].mxu0 %v1084
        %v1246 = vpop.f32.mrb[0].mxu0
        %v1247 = vadd.f32 %v1106, %v1246
        %v1248 = vpop.f32.mrb[0].mxu0
        %v1249 = vpop.f32.mrb[0].mxu0
        %v1250 = vadd.f32 %v1106, %v1249
        %v1251 = vpop.f32.mrb[0].mxu0
        %1252 = vdwg.mxu0
        %v1253 = vmax.f32 %v1191, 0.0
        %v1254 = vmax.f32 %v1194, 0.0
        %v1255 = vmax.f32 %v1199, 0.0
        %v1256 = vmax.f32 %v1202, 0.0
        %v1257 = vmax.f32 %v1207, 0.0
        %v1258 = vmax.f32 %v1210, 0.0
        %v1259 = vmax.f32 %v1215, 0.0
        %v1260 = vmax.f32 %v1218, 0.0
        %v1261 = vmax.f32 %v1223, 0.0
        %v1262 = vmax.f32 %v1226, 0.0
        %v1263 = vmax.f32 %v1231, 0.0
        %v1264 = vmax.f32 %v1234, 0.0
        %v1265 = vmax.f32 %v1239, 0.0
        %v1266 = vmax.f32 %v1242, 0.0
        %v1267 = vmax.f32 %v1247, 0.0
        %v1268 = vmax.f32 %v1250, 0.0
        %v1269 = vpack.c.bf16 %v1254, %v1253
        %v1270 = vpack.c.bf16 %v1256, %v1255
        %v1271 = vpack.c.bf16 %v1258, %v1257
        %v1272 = vpack.c.bf16 %v1260, %v1259
        %v1273 = vpack.c.bf16 %v1262, %v1261
        %v1274 = vpack.c.bf16 %v1264, %v1263
        %v1275 = vpack.c.bf16 %v1266, %v1265
        %v1276 = vpack.c.bf16 %v1268, %v1267
        %v1277 = vld [vmem:[#allocation18] sm:$0x1]
        %v1278 = vld [vmem:[#allocation2] sm:$0x1]
        %1280 = vset.pattern.permute.xlu0 0
        %1281 = vperm.xlu0 %1280, %v1278
        %v1282 = vpop.permute.xlu0 %1281
        %v1284 = vlaneseq
        %v1285 = vshrl.u32 %v1284, 7
        %v1286 = vsub.s32 0, %v1285
        %v1287 = vrot.slane %v1282, %v1286
        %1288 = vmatprep.subr.bf16.mxu0 0
        %1289 = vmatpush1.bf16.xpose.msra.mxu0 %v1269
        %1290 = vmatprep.subr.bf16.mxu0 0
        %1291 = vmatpush1.bf16.xpose.msra.mxu0 %v1270
        %1292 = vmatprep.subr.bf16.mxu0 0
        %1293 = vmatpush1.bf16.xpose.msra.mxu0 %v1271
        %1294 = vmatprep.subr.bf16.mxu0 0
        %1295 = vmatpush1.bf16.xpose.msra.mxu0 %v1272
        %1296 = vmatprep.subr.bf16.mxu0 0
        %1297 = vmatpush1.bf16.xpose.msra.mxu0 %v1273
        %1298 = vmatprep.subr.bf16.mxu0 0
        %1299 = vmatpush1.bf16.xpose.msra.mxu0 %v1274
        %1300 = vmatprep.subr.bf16.mxu0 0
        %1301 = vmatpush1.bf16.xpose.msra.mxu0 %v1275
        %1302 = vmatprep.subr.bf16.mxu0 0
        %1303 = vmatpush1.bf16.xpose.msra.mxu0 %v1276
        %1304 = vmatprep.subr.bf16.mxu0 0
        %1305 = vmatpush1.bf16.xpose.msra.mxu0 0
        %1306 = vmatprep.subr.bf16.mxu0 0
        %1307 = vmatpush1.bf16.xpose.msra.mxu0 0
        %1308 = vmatprep.subr.bf16.mxu0 0
        %1309 = vmatpush1.bf16.xpose.msra.mxu0 0
        %1310 = vmatprep.subr.bf16.mxu0 0
        %1311 = vmatpush1.bf16.xpose.msra.mxu0 0
        %1312 = vmatprep.subr.bf16.mxu0 0
        %1313 = vmatpush1.bf16.xpose.msra.mxu0 0
        %1314 = vmatprep.subr.bf16.mxu0 0
        %1315 = vmatpush1.bf16.xpose.msra.mxu0 0
        %1316 = vmatprep.subr.bf16.mxu0 0
        %1317 = vmatpush1.bf16.xpose.msra.mxu0 0
        %1318 = vmatprep.subr.bf16.mxu0 0
        %1319 = vmatpush1.bf16.xpose.msra.mxu0 0
        %1320 = vmatprep.mubr.bf16.mxu0 0
        %1321 = vmatmul.mubr.bf16.gmra.mrb[0].mxu0 %v1277
        %v1322 = vpop.f32.mrb[0].mxu0
        %v1323 = vadd.f32 %v1287, %v1322
        %v1324 = vpop.f32.mrb[0].mxu0
        %v1325 = vpop.f32.mrb[0].mxu0
        %v1326 = vpop.f32.mrb[0].mxu0
        %1327 = vdwg.mxu0
        %v1328 = vlaneseq
        %vm1329 = vcmp.ge.s32.totalorder %v1328, 0
        %vm1330 = vcmp.lt.s32.totalorder %v1328, 128
        %vm1331 = vmand %vm1329, %vm1330
        %1332 = vst.msk [vmem:[%s523] sm:$0x1] %vm1331, %v1323
        %v1333 = vld [vmem:[%s449 + $0x4] sm:$0xf]
        %v1334 = vld [vmem:[#allocation6] sm:$0xf]
        %v1335 = vld [vmem:[#allocation8] sm:$0x1]
        %v1337 = vlaneseq
        %v1338 = vshrl.u32 %v1337, 7
        %v1339 = vsub.s32 0, %v1338
        %v1340 = vrot.slane %v1335, %v1339
        %1342 = vxpose.xlu0.c.b16.start [1/8] %v1333, 128
        %1343 = vxpose.xlu0.c.b16.cont [2/8] 0, 128
        %1344 = vxpose.xlu0.c.b16.cont [3/8] 0, 128
        %1345 = vxpose.xlu0.c.b16.cont [4/8] 0, 128
        %1346 = vxpose.xlu0.c.b16.cont [5/8] 0, 128
        %1347 = vxpose.xlu0.c.b16.cont [6/8] 0, 128
        %1348 = vxpose.xlu0.c.b16.cont [7/8] 0, 128
        %1349 = vxpose.xlu0.c.b16.end [8/8] 0, 128
        %v1350 = vpop.trf.xlu0
        %v1351 = vpop.trf.xlu0
        %v1352 = vpop.trf.xlu0
        %v1353 = vpop.trf.xlu0
        %v1354 = vpop.trf.xlu0
        %v1355 = vpop.trf.xlu0
        %v1356 = vpop.trf.xlu0
        %v1357 = vpop.trf.xlu0
        %v1359 = vsel %vm551, %v1350, 0
        %v1362 = vsel %vm551, %v1351, 0
        %v1365 = vsel %vm551, %v1352, 0
        %v1368 = vsel %vm551, %v1353, 0
        %v1371 = vsel %vm551, %v1354, 0
        %v1374 = vsel %vm551, %v1355, 0
        %v1377 = vsel %vm551, %v1356, 0
        %v1380 = vsel %vm551, %v1357, 0
        %v1383 = vsel %vm576, %v1334, 0
        %1385 = vmatprep.subr.bf16.mxu0 0
        %1386 = vmatpush1.bf16.msra.mxu0 %v1383
        %1387 = vmatprep.subr.bf16.mxu0 0
        %1388 = vmatpush1.bf16.msra.mxu0 0
        %1389 = vmatprep.subr.bf16.mxu0 0
        %1390 = vmatpush1.bf16.msra.mxu0 0
        %1391 = vmatprep.subr.bf16.mxu0 0
        %1392 = vmatpush1.bf16.msra.mxu0 0
        %1393 = vmatprep.subr.bf16.mxu0 0
        %1394 = vmatpush1.bf16.msra.mxu0 0
        %1395 = vmatprep.subr.bf16.mxu0 0
        %1396 = vmatpush1.bf16.msra.mxu0 0
        %1397 = vmatprep.subr.bf16.mxu0 0
        %1398 = vmatpush1.bf16.msra.mxu0 0
        %1399 = vmatprep.subr.bf16.mxu0 0
        %1400 = vmatpush1.bf16.msra.mxu0 0
        %1401 = vmatprep.subr.bf16.mxu0 0
        %1402 = vmatpush1.bf16.msra.mxu0 0
        %1403 = vmatprep.subr.bf16.mxu0 0
        %1404 = vmatpush1.bf16.msra.mxu0 0
        %1405 = vmatprep.subr.bf16.mxu0 0
        %1406 = vmatpush1.bf16.msra.mxu0 0
        %1407 = vmatprep.subr.bf16.mxu0 0
        %1408 = vmatpush1.bf16.msra.mxu0 0
        %1409 = vmatprep.subr.bf16.mxu0 0
        %1410 = vmatpush1.bf16.msra.mxu0 0
        %1411 = vmatprep.subr.bf16.mxu0 0
        %1412 = vmatpush1.bf16.msra.mxu0 0
        %1413 = vmatprep.subr.bf16.mxu0 0
        %1414 = vmatpush1.bf16.msra.mxu0 0
        %1415 = vmatprep.subr.bf16.mxu0 0
        %1416 = vmatpush1.bf16.msra.mxu0 0
        %1417 = vmatprep.mubr.bf16.mxu0 0
        %1418 = vmatmul.mubr.bf16.gmra.mrb[0].mxu0 %v1359
        %v1419 = vpop.f32.mrb[0].mxu0
        %v1420 = vadd.f32 %v1340, %v1419
        %v1421 = vpop.f32.mrb[0].mxu0
        %v1422 = vpop.f32.mrb[0].mxu0
        %v1423 = vadd.f32 %v1340, %v1422
        %v1424 = vpop.f32.mrb[0].mxu0
        %1425 = vmatprep.mubr.bf16.mxu0 0
        %1426 = vmatmul.mubr.bf16.gmra.mrb[0].mxu0 %v1362
        %v1427 = vpop.f32.mrb[0].mxu0
        %v1428 = vadd.f32 %v1340, %v1427
        %v1429 = vpop.f32.mrb[0].mxu0
        %v1430 = vpop.f32.mrb[0].mxu0
        %v1431 = vadd.f32 %v1340, %v1430
        %v1432 = vpop.f32.mrb[0].mxu0
        %1433 = vmatprep.mubr.bf16.mxu0 0
        %1434 = vmatmul.mubr.bf16.gmra.mrb[0].mxu0 %v1365
        %v1435 = vpop.f32.mrb[0].mxu0
        %v1436 = vadd.f32 %v1340, %v1435
        %v1437 = vpop.f32.mrb[0].mxu0
        %v1438 = vpop.f32.mrb[0].mxu0
        %v1439 = vadd.f32 %v1340, %v1438
        %v1440 = vpop.f32.mrb[0].mxu0
        %1441 = vmatprep.mubr.bf16.mxu0 0
        %1442 = vmatmul.mubr.bf16.gmra.mrb[0].mxu0 %v1368
        %v1443 = vpop.f32.mrb[0].mxu0
        %v1444 = vadd.f32 %v1340, %v1443
        %v1445 = vpop.f32.mrb[0].mxu0
        %v1446 = vpop.f32.mrb[0].mxu0
        %v1447 = vadd.f32 %v1340, %v1446
        %v1448 = vpop.f32.mrb[0].mxu0
        %1449 = vmatprep.mubr.bf16.mxu0 0
        %1450 = vmatmul.mubr.bf16.gmra.mrb[0].mxu0 %v1371
        %v1451 = vpop.f32.mrb[0].mxu0
        %v1452 = vadd.f32 %v1340, %v1451
        %v1453 = vpop.f32.mrb[0].mxu0
        %v1454 = vpop.f32.mrb[0].mxu0
        %v1455 = vadd.f32 %v1340, %v1454
        %v1456 = vpop.f32.mrb[0].mxu0
        %1457 = vmatprep.mubr.bf16.mxu0 0
        %1458 = vmatmul.mubr.bf16.gmra.mrb[0].mxu0 %v1374
        %v1459 = vpop.f32.mrb[0].mxu0
        %v1460 = vadd.f32 %v1340, %v1459
        %v1461 = vpop.f32.mrb[0].mxu0
        %v1462 = vpop.f32.mrb[0].mxu0
        %v1463 = vadd.f32 %v1340, %v1462
        %v1464 = vpop.f32.mrb[0].mxu0
        %1465 = vmatprep.mubr.bf16.mxu0 0
        %1466 = vmatmul.mubr.bf16.gmra.mrb[0].mxu0 %v1377
        %v1467 = vpop.f32.mrb[0].mxu0
        %v1468 = vadd.f32 %v1340, %v1467
        %v1469 = vpop.f32.mrb[0].mxu0
        %v1470 = vpop.f32.mrb[0].mxu0
        %v1471 = vadd.f32 %v1340, %v1470
        %v1472 = vpop.f32.mrb[0].mxu0
        %1473 = vmatprep.mubr.bf16.mxu0 0
        %1474 = vmatmul.mubr.bf16.gmra.mrb[0].mxu0 %v1380
        %v1475 = vpop.f32.mrb[0].mxu0
        %v1476 = vadd.f32 %v1340, %v1475
        %v1477 = vpop.f32.mrb[0].mxu0
        %v1478 = vpop.f32.mrb[0].mxu0
        %v1479 = vadd.f32 %v1340, %v1478
        %v1480 = vpop.f32.mrb[0].mxu0
        %1481 = vdwg.mxu0
        %v1482 = vmax.f32 %v1420, 0.0
        %v1483 = vmax.f32 %v1423, 0.0
        %v1484 = vmax.f32 %v1428, 0.0
        %v1485 = vmax.f32 %v1431, 0.0
        %v1486 = vmax.f32 %v1436, 0.0
        %v1487 = vmax.f32 %v1439, 0.0
        %v1488 = vmax.f32 %v1444, 0.0
        %v1489 = vmax.f32 %v1447, 0.0
        %v1490 = vmax.f32 %v1452, 0.0
        %v1491 = vmax.f32 %v1455, 0.0
        %v1492 = vmax.f32 %v1460, 0.0
        %v1493 = vmax.f32 %v1463, 0.0
        %v1494 = vmax.f32 %v1468, 0.0
        %v1495 = vmax.f32 %v1471, 0.0
        %v1496 = vmax.f32 %v1476, 0.0
        %v1497 = vmax.f32 %v1479, 0.0
        %v1498 = vpack.c.bf16 %v1483, %v1482
        %v1499 = vpack.c.bf16 %v1485, %v1484
        %v1500 = vpack.c.bf16 %v1487, %v1486
        %v1501 = vpack.c.bf16 %v1489, %v1488
        %v1502 = vpack.c.bf16 %v1491, %v1490
        %v1503 = vpack.c.bf16 %v1493, %v1492
        %v1504 = vpack.c.bf16 %v1495, %v1494
        %v1505 = vpack.c.bf16 %v1497, %v1496
        %v1506 = vld [vmem:[#allocation9] sm:$0xf]
        %v1507 = vld [vmem:[#allocation9 + $0x4] sm:$0xf]
        %v1508 = vld [vmem:[#allocation9 + $0x8] sm:$0xf]
        %v1509 = vld [vmem:[#allocation9 + $0xc] sm:$0xf]
        %v1510 = vld [vmem:[#allocation9 + $0x10] sm:$0xf]
        %v1511 = vld [vmem:[#allocation9 + $0x14] sm:$0xf]
        %v1512 = vld [vmem:[#allocation9 + $0x18] sm:$0xf]
        %v1513 = vld [vmem:[#allocation9 + $0x1c] sm:$0xf]
        %v1514 = vld [vmem:[#allocation9 + $0x20] sm:$0xf]
        %v1515 = vld [vmem:[#allocation9 + $0x24] sm:$0xf]
        %v1516 = vld [vmem:[#allocation9 + $0x28] sm:$0xf]
        %v1517 = vld [vmem:[#allocation9 + $0x2c] sm:$0xf]
        %v1518 = vld [vmem:[#allocation9 + $0x30] sm:$0xf]
        %v1519 = vld [vmem:[#allocation9 + $0x34] sm:$0xf]
        %v1520 = vld [vmem:[#allocation9 + $0x38] sm:$0xf]
        %v1521 = vld [vmem:[#allocation9 + $0x3c] sm:$0xf]
        %v1522 = vld [vmem:[#allocation11] sm:$0x1]
        %v1524 = vlaneseq
        %v1525 = vshrl.u32 %v1524, 7
        %v1526 = vsub.s32 0, %v1525
        %v1527 = vrot.slane %v1522, %v1526
        %v1545 = vunpack.c.l.b16 %v1506
        %v1546 = vunpack.c.l.b16 %v1507
        %v1547 = vunpack.c.l.b16 %v1508
        %v1548 = vunpack.c.l.b16 %v1509
        %v1549 = vunpack.c.l.b16 %v1510
        %v1550 = vunpack.c.l.b16 %v1511
        %v1551 = vunpack.c.l.b16 %v1512
        %v1552 = vunpack.c.l.b16 %v1513
        %v1553 = vunpack.c.l.b16 %v1514
        %v1554 = vunpack.c.l.b16 %v1515
        %v1555 = vunpack.c.l.b16 %v1516
        %v1556 = vunpack.c.l.b16 %v1517
        %v1557 = vunpack.c.l.b16 %v1518
        %v1558 = vunpack.c.l.b16 %v1519
        %v1559 = vunpack.c.l.b16 %v1520
        %v1560 = vunpack.c.l.b16 %v1521
        %v1561 = vpack.c.b16 %v1546, %v1545
        %v1562 = vpack.c.b16 %v1548, %v1547
        %v1563 = vpack.c.b16 %v1550, %v1549
        %v1564 = vpack.c.b16 %v1552, %v1551
        %v1565 = vpack.c.b16 %v1554, %v1553
        %v1566 = vpack.c.b16 %v1556, %v1555
        %v1567 = vpack.c.b16 %v1558, %v1557
        %v1568 = vpack.c.b16 %v1560, %v1559
        %1577 = vmatprep.subr.bf16.mxu0 0
        %1578 = vmatpush1.bf16.msra.mxu0 %v1561
        %1579 = vmatprep.subr.bf16.mxu0 0
        %1580 = vmatpush1.bf16.msra.mxu0 %v1562
        %1581 = vmatprep.subr.bf16.mxu0 0
        %1582 = vmatpush1.bf16.msra.mxu0 %v1563
        %1583 = vmatprep.subr.bf16.mxu0 0
        %1584 = vmatpush1.bf16.msra.mxu0 %v1564
        %1585 = vmatprep.subr.bf16.mxu0 0
        %1586 = vmatpush1.bf16.msra.mxu0 %v1565
        %1587 = vmatprep.subr.bf16.mxu0 0
        %1588 = vmatpush1.bf16.msra.mxu0 %v1566
        %1589 = vmatprep.subr.bf16.mxu0 0
        %1590 = vmatpush1.bf16.msra.mxu0 %v1567
        %1591 = vmatprep.subr.bf16.mxu0 0
        %1592 = vmatpush1.bf16.msra.mxu0 %v1568
        %1593 = vmatprep.subr.bf16.mxu0 0
        %1594 = vmatpush1.bf16.msra.mxu0 0
        %1595 = vmatprep.subr.bf16.mxu0 0
        %1596 = vmatpush1.bf16.msra.mxu0 0
        %1597 = vmatprep.subr.bf16.mxu0 0
        %1598 = vmatpush1.bf16.msra.mxu0 0
        %1599 = vmatprep.subr.bf16.mxu0 0
        %1600 = vmatpush1.bf16.msra.mxu0 0
        %1601 = vmatprep.subr.bf16.mxu0 0
        %1602 = vmatpush1.bf16.msra.mxu0 0
        %1603 = vmatprep.subr.bf16.mxu0 0
        %1604 = vmatpush1.bf16.msra.mxu0 0
        %1605 = vmatprep.subr.bf16.mxu0 0
        %1606 = vmatpush1.bf16.msra.mxu0 0
        %1607 = vmatprep.subr.bf16.mxu0 0
        %1608 = vmatpush1.bf16.msra.mxu0 0
        %1609 = vmatprep.mubr.bf16.mxu0 0
        %1610 = vmatmul.mubr.bf16.gmra.mrb[0].mxu0 %v1498
        %v1611 = vpop.f32.mrb[0].mxu0
        %v1612 = vadd.f32 %v1527, %v1611
        %v1613 = vpop.f32.mrb[0].mxu0
        %v1614 = vpop.f32.mrb[0].mxu0
        %v1615 = vadd.f32 %v1527, %v1614
        %v1616 = vpop.f32.mrb[0].mxu0
        %1617 = vmatprep.mubr.bf16.mxu0 0
        %1618 = vmatmul.mubr.bf16.gmra.mrb[0].mxu0 %v1499
        %v1619 = vpop.f32.mrb[0].mxu0
        %v1620 = vadd.f32 %v1527, %v1619
        %v1621 = vpop.f32.mrb[0].mxu0
        %v1622 = vpop.f32.mrb[0].mxu0
        %v1623 = vadd.f32 %v1527, %v1622
        %v1624 = vpop.f32.mrb[0].mxu0
        %1625 = vmatprep.mubr.bf16.mxu0 0
        %1626 = vmatmul.mubr.bf16.gmra.mrb[0].mxu0 %v1500
        %v1627 = vpop.f32.mrb[0].mxu0
        %v1628 = vadd.f32 %v1527, %v1627
        %v1629 = vpop.f32.mrb[0].mxu0
        %v1630 = vpop.f32.mrb[0].mxu0
        %v1631 = vadd.f32 %v1527, %v1630
        %v1632 = vpop.f32.mrb[0].mxu0
        %1633 = vmatprep.mubr.bf16.mxu0 0
        %1634 = vmatmul.mubr.bf16.gmra.mrb[0].mxu0 %v1501
        %v1635 = vpop.f32.mrb[0].mxu0
        %v1636 = vadd.f32 %v1527, %v1635
        %v1637 = vpop.f32.mrb[0].mxu0
        %v1638 = vpop.f32.mrb[0].mxu0
        %v1639 = vadd.f32 %v1527, %v1638
        %v1640 = vpop.f32.mrb[0].mxu0
        %1641 = vmatprep.mubr.bf16.mxu0 0
        %1642 = vmatmul.mubr.bf16.gmra.mrb[0].mxu0 %v1502
        %v1643 = vpop.f32.mrb[0].mxu0
        %v1644 = vadd.f32 %v1527, %v1643
        %v1645 = vpop.f32.mrb[0].mxu0
        %v1646 = vpop.f32.mrb[0].mxu0
        %v1647 = vadd.f32 %v1527, %v1646
        %v1648 = vpop.f32.mrb[0].mxu0
        %1649 = vmatprep.mubr.bf16.mxu0 0
        %1650 = vmatmul.mubr.bf16.gmra.mrb[0].mxu0 %v1503
        %v1651 = vpop.f32.mrb[0].mxu0
        %v1652 = vadd.f32 %v1527, %v1651
        %v1653 = vpop.f32.mrb[0].mxu0
        %v1654 = vpop.f32.mrb[0].mxu0
        %v1655 = vadd.f32 %v1527, %v1654
        %v1656 = vpop.f32.mrb[0].mxu0
        %1657 = vmatprep.mubr.bf16.mxu0 0
        %1658 = vmatmul.mubr.bf16.gmra.mrb[0].mxu0 %v1504
        %v1659 = vpop.f32.mrb[0].mxu0
        %v1660 = vadd.f32 %v1527, %v1659
        %v1661 = vpop.f32.mrb[0].mxu0
        %v1662 = vpop.f32.mrb[0].mxu0
        %v1663 = vadd.f32 %v1527, %v1662
        %v1664 = vpop.f32.mrb[0].mxu0
        %1665 = vmatprep.mubr.bf16.mxu0 0
        %1666 = vmatmul.mubr.bf16.gmra.mrb[0].mxu0 %v1505
        %v1667 = vpop.f32.mrb[0].mxu0
        %v1668 = vadd.f32 %v1527, %v1667
        %v1669 = vpop.f32.mrb[0].mxu0
        %v1670 = vpop.f32.mrb[0].mxu0
        %v1671 = vadd.f32 %v1527, %v1670
        %v1672 = vpop.f32.mrb[0].mxu0
        %1673 = vdwg.mxu0
        %v1674 = vmax.f32 %v1612, 0.0
        %v1675 = vmax.f32 %v1615, 0.0
        %v1676 = vmax.f32 %v1620, 0.0
        %v1677 = vmax.f32 %v1623, 0.0
        %v1678 = vmax.f32 %v1628, 0.0
        %v1679 = vmax.f32 %v1631, 0.0
        %v1680 = vmax.f32 %v1636, 0.0
        %v1681 = vmax.f32 %v1639, 0.0
        %v1682 = vmax.f32 %v1644, 0.0
        %v1683 = vmax.f32 %v1647, 0.0
        %v1684 = vmax.f32 %v1652, 0.0
        %v1685 = vmax.f32 %v1655, 0.0
        %v1686 = vmax.f32 %v1660, 0.0
        %v1687 = vmax.f32 %v1663, 0.0
        %v1688 = vmax.f32 %v1668, 0.0
        %v1689 = vmax.f32 %v1671, 0.0
        %v1690 = vpack.c.bf16 %v1675, %v1674
        %v1691 = vpack.c.bf16 %v1677, %v1676
        %v1692 = vpack.c.bf16 %v1679, %v1678
        %v1693 = vpack.c.bf16 %v1681, %v1680
        %v1694 = vpack.c.bf16 %v1683, %v1682
        %v1695 = vpack.c.bf16 %v1685, %v1684
        %v1696 = vpack.c.bf16 %v1687, %v1686
        %v1697 = vpack.c.bf16 %v1689, %v1688
        %v1698 = vld [vmem:[#allocation12] sm:$0xf]
        %v1699 = vld [vmem:[#allocation12 + $0x4] sm:$0xf]
        %v1700 = vld [vmem:[#allocation12 + $0x8] sm:$0xf]
        %v1701 = vld [vmem:[#allocation12 + $0xc] sm:$0xf]
        %v1702 = vld [vmem:[#allocation12 + $0x10] sm:$0xf]
        %v1703 = vld [vmem:[#allocation12 + $0x14] sm:$0xf]
        %v1704 = vld [vmem:[#allocation12 + $0x18] sm:$0xf]
        %v1705 = vld [vmem:[#allocation12 + $0x1c] sm:$0xf]
        %v1706 = vld [vmem:[#allocation12 + $0x20] sm:$0xf]
        %v1707 = vld [vmem:[#allocation12 + $0x24] sm:$0xf]
        %v1708 = vld [vmem:[#allocation12 + $0x28] sm:$0xf]
        %v1709 = vld [vmem:[#allocation12 + $0x2c] sm:$0xf]
        %v1710 = vld [vmem:[#allocation12 + $0x30] sm:$0xf]
        %v1711 = vld [vmem:[#allocation12 + $0x34] sm:$0xf]
        %v1712 = vld [vmem:[#allocation12 + $0x38] sm:$0xf]
        %v1713 = vld [vmem:[#allocation12 + $0x3c] sm:$0xf]
        %v1714 = vld [vmem:[#allocation14] sm:$0x1]
        %v1716 = vlaneseq
        %v1717 = vshrl.u32 %v1716, 7
        %v1718 = vsub.s32 0, %v1717
        %v1719 = vrot.slane %v1714, %v1718
        %v1737 = vunpack.c.l.b16 %v1698
        %v1738 = vunpack.c.l.b16 %v1699
        %v1739 = vunpack.c.l.b16 %v1700
        %v1740 = vunpack.c.l.b16 %v1701
        %v1741 = vunpack.c.l.b16 %v1702
        %v1742 = vunpack.c.l.b16 %v1703
        %v1743 = vunpack.c.l.b16 %v1704
        %v1744 = vunpack.c.l.b16 %v1705
        %v1745 = vunpack.c.l.b16 %v1706
        %v1746 = vunpack.c.l.b16 %v1707
        %v1747 = vunpack.c.l.b16 %v1708
        %v1748 = vunpack.c.l.b16 %v1709
        %v1749 = vunpack.c.l.b16 %v1710
        %v1750 = vunpack.c.l.b16 %v1711
        %v1751 = vunpack.c.l.b16 %v1712
        %v1752 = vunpack.c.l.b16 %v1713
        %v1753 = vpack.c.b16 %v1738, %v1737
        %v1754 = vpack.c.b16 %v1740, %v1739
        %v1755 = vpack.c.b16 %v1742, %v1741
        %v1756 = vpack.c.b16 %v1744, %v1743
        %v1757 = vpack.c.b16 %v1746, %v1745
        %v1758 = vpack.c.b16 %v1748, %v1747
        %v1759 = vpack.c.b16 %v1750, %v1749
        %v1760 = vpack.c.b16 %v1752, %v1751
        %1769 = vmatprep.subr.bf16.mxu0 0
        %1770 = vmatpush1.bf16.msra.mxu0 %v1753
        %1771 = vmatprep.subr.bf16.mxu0 0
        %1772 = vmatpush1.bf16.msra.mxu0 %v1754
        %1773 = vmatprep.subr.bf16.mxu0 0
        %1774 = vmatpush1.bf16.msra.mxu0 %v1755
        %1775 = vmatprep.subr.bf16.mxu0 0
        %1776 = vmatpush1.bf16.msra.mxu0 %v1756
        %1777 = vmatprep.subr.bf16.mxu0 0
        %1778 = vmatpush1.bf16.msra.mxu0 %v1757
        %1779 = vmatprep.subr.bf16.mxu0 0
        %1780 = vmatpush1.bf16.msra.mxu0 %v1758
        %1781 = vmatprep.subr.bf16.mxu0 0
        %1782 = vmatpush1.bf16.msra.mxu0 %v1759
        %1783 = vmatprep.subr.bf16.mxu0 0
        %1784 = vmatpush1.bf16.msra.mxu0 %v1760
        %1785 = vmatprep.subr.bf16.mxu0 0
        %1786 = vmatpush1.bf16.msra.mxu0 0
        %1787 = vmatprep.subr.bf16.mxu0 0
        %1788 = vmatpush1.bf16.msra.mxu0 0
        %1789 = vmatprep.subr.bf16.mxu0 0
        %1790 = vmatpush1.bf16.msra.mxu0 0
        %1791 = vmatprep.subr.bf16.mxu0 0
        %1792 = vmatpush1.bf16.msra.mxu0 0
        %1793 = vmatprep.subr.bf16.mxu0 0
        %1794 = vmatpush1.bf16.msra.mxu0 0
        %1795 = vmatprep.subr.bf16.mxu0 0
        %1796 = vmatpush1.bf16.msra.mxu0 0
        %1797 = vmatprep.subr.bf16.mxu0 0
        %1798 = vmatpush1.bf16.msra.mxu0 0
        %1799 = vmatprep.subr.bf16.mxu0 0
        %1800 = vmatpush1.bf16.msra.mxu0 0
        %1801 = vmatprep.mubr.bf16.mxu0 0
        %1802 = vmatmul.mubr.bf16.gmra.mrb[0].mxu0 %v1690
        %v1803 = vpop.f32.mrb[0].mxu0
        %v1804 = vadd.f32 %v1719, %v1803
        %v1805 = vpop.f32.mrb[0].mxu0
        %v1806 = vpop.f32.mrb[0].mxu0
        %v1807 = vadd.f32 %v1719, %v1806
        %v1808 = vpop.f32.mrb[0].mxu0
        %1809 = vmatprep.mubr.bf16.mxu0 0
        %1810 = vmatmul.mubr.bf16.gmra.mrb[0].mxu0 %v1691
        %v1811 = vpop.f32.mrb[0].mxu0
        %v1812 = vadd.f32 %v1719, %v1811
        %v1813 = vpop.f32.mrb[0].mxu0
        %v1814 = vpop.f32.mrb[0].mxu0
        %v1815 = vadd.f32 %v1719, %v1814
        %v1816 = vpop.f32.mrb[0].mxu0
        %1817 = vmatprep.mubr.bf16.mxu0 0
        %1818 = vmatmul.mubr.bf16.gmra.mrb[0].mxu0 %v1692
        %v1819 = vpop.f32.mrb[0].mxu0
        %v1820 = vadd.f32 %v1719, %v1819
        %v1821 = vpop.f32.mrb[0].mxu0
        %v1822 = vpop.f32.mrb[0].mxu0
        %v1823 = vadd.f32 %v1719, %v1822
        %v1824 = vpop.f32.mrb[0].mxu0
        %1825 = vmatprep.mubr.bf16.mxu0 0
        %1826 = vmatmul.mubr.bf16.gmra.mrb[0].mxu0 %v1693
        %v1827 = vpop.f32.mrb[0].mxu0
        %v1828 = vadd.f32 %v1719, %v1827
        %v1829 = vpop.f32.mrb[0].mxu0
        %v1830 = vpop.f32.mrb[0].mxu0
        %v1831 = vadd.f32 %v1719, %v1830
        %v1832 = vpop.f32.mrb[0].mxu0
        %1833 = vmatprep.mubr.bf16.mxu0 0
        %1834 = vmatmul.mubr.bf16.gmra.mrb[0].mxu0 %v1694
        %v1835 = vpop.f32.mrb[0].mxu0
        %v1836 = vadd.f32 %v1719, %v1835
        %v1837 = vpop.f32.mrb[0].mxu0
        %v1838 = vpop.f32.mrb[0].mxu0
        %v1839 = vadd.f32 %v1719, %v1838
        %v1840 = vpop.f32.mrb[0].mxu0
        %1841 = vmatprep.mubr.bf16.mxu0 0
        %1842 = vmatmul.mubr.bf16.gmra.mrb[0].mxu0 %v1695
        %v1843 = vpop.f32.mrb[0].mxu0
        %v1844 = vadd.f32 %v1719, %v1843
        %v1845 = vpop.f32.mrb[0].mxu0
        %v1846 = vpop.f32.mrb[0].mxu0
        %v1847 = vadd.f32 %v1719, %v1846
        %v1848 = vpop.f32.mrb[0].mxu0
        %1849 = vmatprep.mubr.bf16.mxu0 0
        %1850 = vmatmul.mubr.bf16.gmra.mrb[0].mxu0 %v1696
        %v1851 = vpop.f32.mrb[0].mxu0
        %v1852 = vadd.f32 %v1719, %v1851
        %v1853 = vpop.f32.mrb[0].mxu0
        %v1854 = vpop.f32.mrb[0].mxu0
        %v1855 = vadd.f32 %v1719, %v1854
        %v1856 = vpop.f32.mrb[0].mxu0
        %1857 = vmatprep.mubr.bf16.mxu0 0
        %1858 = vmatmul.mubr.bf16.gmra.mrb[0].mxu0 %v1697
        %v1859 = vpop.f32.mrb[0].mxu0
        %v1860 = vadd.f32 %v1719, %v1859
        %v1861 = vpop.f32.mrb[0].mxu0
        %v1862 = vpop.f32.mrb[0].mxu0
        %v1863 = vadd.f32 %v1719, %v1862
        %v1864 = vpop.f32.mrb[0].mxu0
        %1865 = vdwg.mxu0
        %v1866 = vmax.f32 %v1804, 0.0
        %v1867 = vmax.f32 %v1807, 0.0
        %v1868 = vmax.f32 %v1812, 0.0
        %v1869 = vmax.f32 %v1815, 0.0
        %v1870 = vmax.f32 %v1820, 0.0
        %v1871 = vmax.f32 %v1823, 0.0
        %v1872 = vmax.f32 %v1828, 0.0
        %v1873 = vmax.f32 %v1831, 0.0
        %v1874 = vmax.f32 %v1836, 0.0
        %v1875 = vmax.f32 %v1839, 0.0
        %v1876 = vmax.f32 %v1844, 0.0
        %v1877 = vmax.f32 %v1847, 0.0
        %v1878 = vmax.f32 %v1852, 0.0
        %v1879 = vmax.f32 %v1855, 0.0
        %v1880 = vmax.f32 %v1860, 0.0
        %v1881 = vmax.f32 %v1863, 0.0
        %v1882 = vpack.c.bf16 %v1867, %v1866
        %v1883 = vpack.c.bf16 %v1869, %v1868
        %v1884 = vpack.c.bf16 %v1871, %v1870
        %v1885 = vpack.c.bf16 %v1873, %v1872
        %v1886 = vpack.c.bf16 %v1875, %v1874
        %v1887 = vpack.c.bf16 %v1877, %v1876
        %v1888 = vpack.c.bf16 %v1879, %v1878
        %v1889 = vpack.c.bf16 %v1881, %v1880
        %v1890 = vld [vmem:[#allocation15] sm:$0xf]
        %v1891 = vld [vmem:[#allocation15 + $0x4] sm:$0xf]
        %v1892 = vld [vmem:[#allocation15 + $0x8] sm:$0xf]
        %v1893 = vld [vmem:[#allocation15 + $0xc] sm:$0xf]
        %v1894 = vld [vmem:[#allocation15 + $0x10] sm:$0xf]
        %v1895 = vld [vmem:[#allocation15 + $0x14] sm:$0xf]
        %v1896 = vld [vmem:[#allocation15 + $0x18] sm:$0xf]
        %v1897 = vld [vmem:[#allocation15 + $0x1c] sm:$0xf]
        %v1898 = vld [vmem:[#allocation15 + $0x20] sm:$0xf]
        %v1899 = vld [vmem:[#allocation15 + $0x24] sm:$0xf]
        %v1900 = vld [vmem:[#allocation15 + $0x28] sm:$0xf]
        %v1901 = vld [vmem:[#allocation15 + $0x2c] sm:$0xf]
        %v1902 = vld [vmem:[#allocation15 + $0x30] sm:$0xf]
        %v1903 = vld [vmem:[#allocation15 + $0x34] sm:$0xf]
        %v1904 = vld [vmem:[#allocation15 + $0x38] sm:$0xf]
        %v1905 = vld [vmem:[#allocation15 + $0x3c] sm:$0xf]
        %v1906 = vld [vmem:[#allocation17] sm:$0x1]
        %v1908 = vlaneseq
        %v1909 = vshrl.u32 %v1908, 7
        %v1910 = vsub.s32 0, %v1909
        %v1911 = vrot.slane %v1906, %v1910
        %v1929 = vunpack.c.l.b16 %v1890
        %v1930 = vunpack.c.l.b16 %v1891
        %v1931 = vunpack.c.l.b16 %v1892
        %v1932 = vunpack.c.l.b16 %v1893
        %v1933 = vunpack.c.l.b16 %v1894
        %v1934 = vunpack.c.l.b16 %v1895
        %v1935 = vunpack.c.l.b16 %v1896
        %v1936 = vunpack.c.l.b16 %v1897
        %v1937 = vunpack.c.l.b16 %v1898
        %v1938 = vunpack.c.l.b16 %v1899
        %v1939 = vunpack.c.l.b16 %v1900
        %v1940 = vunpack.c.l.b16 %v1901
        %v1941 = vunpack.c.l.b16 %v1902
        %v1942 = vunpack.c.l.b16 %v1903
        %v1943 = vunpack.c.l.b16 %v1904
        %v1944 = vunpack.c.l.b16 %v1905
        %v1945 = vpack.c.b16 %v1930, %v1929
        %v1946 = vpack.c.b16 %v1932, %v1931
        %v1947 = vpack.c.b16 %v1934, %v1933
        %v1948 = vpack.c.b16 %v1936, %v1935
        %v1949 = vpack.c.b16 %v1938, %v1937
        %v1950 = vpack.c.b16 %v1940, %v1939
        %v1951 = vpack.c.b16 %v1942, %v1941
        %v1952 = vpack.c.b16 %v1944, %v1943
        %1961 = vmatprep.subr.bf16.mxu0 0
        %1962 = vmatpush1.bf16.msra.mxu0 %v1945
        %1963 = vmatprep.subr.bf16.mxu0 0
        %1964 = vmatpush1.bf16.msra.mxu0 %v1946
        %1965 = vmatprep.subr.bf16.mxu0 0
        %1966 = vmatpush1.bf16.msra.mxu0 %v1947
        %1967 = vmatprep.subr.bf16.mxu0 0
        %1968 = vmatpush1.bf16.msra.mxu0 %v1948
        %1969 = vmatprep.subr.bf16.mxu0 0
        %1970 = vmatpush1.bf16.msra.mxu0 %v1949
        %1971 = vmatprep.subr.bf16.mxu0 0
        %1972 = vmatpush1.bf16.msra.mxu0 %v1950
        %1973 = vmatprep.subr.bf16.mxu0 0
        %1974 = vmatpush1.bf16.msra.mxu0 %v1951
        %1975 = vmatprep.subr.bf16.mxu0 0
        %1976 = vmatpush1.bf16.msra.mxu0 %v1952
        %1977 = vmatprep.subr.bf16.mxu0 0
        %1978 = vmatpush1.bf16.msra.mxu0 0
        %1979 = vmatprep.subr.bf16.mxu0 0
        %1980 = vmatpush1.bf16.msra.mxu0 0
        %1981 = vmatprep.subr.bf16.mxu0 0
        %1982 = vmatpush1.bf16.msra.mxu0 0
        %1983 = vmatprep.subr.bf16.mxu0 0
        %1984 = vmatpush1.bf16.msra.mxu0 0
        %1985 = vmatprep.subr.bf16.mxu0 0
        %1986 = vmatpush1.bf16.msra.mxu0 0
        %1987 = vmatprep.subr.bf16.mxu0 0
        %1988 = vmatpush1.bf16.msra.mxu0 0
        %1989 = vmatprep.subr.bf16.mxu0 0
        %1990 = vmatpush1.bf16.msra.mxu0 0
        %1991 = vmatprep.subr.bf16.mxu0 0
        %1992 = vmatpush1.bf16.msra.mxu0 0
        %1993 = vmatprep.mubr.bf16.mxu0 0
        %1994 = vmatmul.mubr.bf16.gmra.mrb[0].mxu0 %v1882
        %v1995 = vpop.f32.mrb[0].mxu0
        %v1996 = vadd.f32 %v1911, %v1995
        %v1997 = vpop.f32.mrb[0].mxu0
        %v1998 = vpop.f32.mrb[0].mxu0
        %v1999 = vadd.f32 %v1911, %v1998
        %v2000 = vpop.f32.mrb[0].mxu0
        %2001 = vmatprep.mubr.bf16.mxu0 0
        %2002 = vmatmul.mubr.bf16.gmra.mrb[0].mxu0 %v1883
        %v2003 = vpop.f32.mrb[0].mxu0
        %v2004 = vadd.f32 %v1911, %v2003
        %v2005 = vpop.f32.mrb[0].mxu0
        %v2006 = vpop.f32.mrb[0].mxu0
        %v2007 = vadd.f32 %v1911, %v2006
        %v2008 = vpop.f32.mrb[0].mxu0
        %2009 = vmatprep.mubr.bf16.mxu0 0
        %2010 = vmatmul.mubr.bf16.gmra.mrb[0].mxu0 %v1884
        %v2011 = vpop.f32.mrb[0].mxu0
        %v2012 = vadd.f32 %v1911, %v2011
        %v2013 = vpop.f32.mrb[0].mxu0
        %v2014 = vpop.f32.mrb[0].mxu0
        %v2015 = vadd.f32 %v1911, %v2014
        %v2016 = vpop.f32.mrb[0].mxu0
        %2017 = vmatprep.mubr.bf16.mxu0 0
        %2018 = vmatmul.mubr.bf16.gmra.mrb[0].mxu0 %v1885
        %v2019 = vpop.f32.mrb[0].mxu0
        %v2020 = vadd.f32 %v1911, %v2019
        %v2021 = vpop.f32.mrb[0].mxu0
        %v2022 = vpop.f32.mrb[0].mxu0
        %v2023 = vadd.f32 %v1911, %v2022
        %v2024 = vpop.f32.mrb[0].mxu0
        %2025 = vmatprep.mubr.bf16.mxu0 0
        %2026 = vmatmul.mubr.bf16.gmra.mrb[0].mxu0 %v1886
        %v2027 = vpop.f32.mrb[0].mxu0
        %v2028 = vadd.f32 %v1911, %v2027
        %v2029 = vpop.f32.mrb[0].mxu0
        %v2030 = vpop.f32.mrb[0].mxu0
        %v2031 = vadd.f32 %v1911, %v2030
        %v2032 = vpop.f32.mrb[0].mxu0
        %2033 = vmatprep.mubr.bf16.mxu0 0
        %2034 = vmatmul.mubr.bf16.gmra.mrb[0].mxu0 %v1887
        %v2035 = vpop.f32.mrb[0].mxu0
        %v2036 = vadd.f32 %v1911, %v2035
        %v2037 = vpop.f32.mrb[0].mxu0
        %v2038 = vpop.f32.mrb[0].mxu0
        %v2039 = vadd.f32 %v1911, %v2038
        %v2040 = vpop.f32.mrb[0].mxu0
        %2041 = vmatprep.mubr.bf16.mxu0 0
        %2042 = vmatmul.mubr.bf16.gmra.mrb[0].mxu0 %v1888
        %v2043 = vpop.f32.mrb[0].mxu0
        %v2044 = vadd.f32 %v1911, %v2043
        %v2045 = vpop.f32.mrb[0].mxu0
        %v2046 = vpop.f32.mrb[0].mxu0
        %v2047 = vadd.f32 %v1911, %v2046
        %v2048 = vpop.f32.mrb[0].mxu0
        %2049 = vmatprep.mubr.bf16.mxu0 0
        %2050 = vmatmul.mubr.bf16.gmra.mrb[0].mxu0 %v1889
        %v2051 = vpop.f32.mrb[0].mxu0
        %v2052 = vadd.f32 %v1911, %v2051
        %v2053 = vpop.f32.mrb[0].mxu0
        %v2054 = vpop.f32.mrb[0].mxu0
        %v2055 = vadd.f32 %v1911, %v2054
        %v2056 = vpop.f32.mrb[0].mxu0
        %2057 = vdwg.mxu0
        %v2058 = vmax.f32 %v1996, 0.0
        %v2059 = vmax.f32 %v1999, 0.0
        %v2060 = vmax.f32 %v2004, 0.0
        %v2061 = vmax.f32 %v2007, 0.0
        %v2062 = vmax.f32 %v2012, 0.0
        %v2063 = vmax.f32 %v2015, 0.0
        %v2064 = vmax.f32 %v2020, 0.0
        %v2065 = vmax.f32 %v2023, 0.0
        %v2066 = vmax.f32 %v2028, 0.0
        %v2067 = vmax.f32 %v2031, 0.0
        %v2068 = vmax.f32 %v2036, 0.0
        %v2069 = vmax.f32 %v2039, 0.0
        %v2070 = vmax.f32 %v2044, 0.0
        %v2071 = vmax.f32 %v2047, 0.0
        %v2072 = vmax.f32 %v2052, 0.0
        %v2073 = vmax.f32 %v2055, 0.0
        %v2074 = vpack.c.bf16 %v2059, %v2058
        %v2075 = vpack.c.bf16 %v2061, %v2060
        %v2076 = vpack.c.bf16 %v2063, %v2062
        %v2077 = vpack.c.bf16 %v2065, %v2064
        %v2078 = vpack.c.bf16 %v2067, %v2066
        %v2079 = vpack.c.bf16 %v2069, %v2068
        %v2080 = vpack.c.bf16 %v2071, %v2070
        %v2081 = vpack.c.bf16 %v2073, %v2072
        %v2082 = vld [vmem:[#allocation18] sm:$0x1]
        %v2083 = vld [vmem:[#allocation2] sm:$0x1]
        %2085 = vset.pattern.permute.xlu0 0
        %2086 = vperm.xlu0 %2085, %v2083
        %v2087 = vpop.permute.xlu0 %2086
        %v2089 = vlaneseq
        %v2090 = vshrl.u32 %v2089, 7
        %v2091 = vsub.s32 0, %v2090
        %v2092 = vrot.slane %v2087, %v2091
        %2093 = vmatprep.subr.bf16.mxu0 0
        %2094 = vmatpush1.bf16.xpose.msra.mxu0 %v2074
        %2095 = vmatprep.subr.bf16.mxu0 0
        %2096 = vmatpush1.bf16.xpose.msra.mxu0 %v2075
        %2097 = vmatprep.subr.bf16.mxu0 0
        %2098 = vmatpush1.bf16.xpose.msra.mxu0 %v2076
        %2099 = vmatprep.subr.bf16.mxu0 0
        %2100 = vmatpush1.bf16.xpose.msra.mxu0 %v2077
        %2101 = vmatprep.subr.bf16.mxu0 0
        %2102 = vmatpush1.bf16.xpose.msra.mxu0 %v2078
        %2103 = vmatprep.subr.bf16.mxu0 0
        %2104 = vmatpush1.bf16.xpose.msra.mxu0 %v2079
        %2105 = vmatprep.subr.bf16.mxu0 0
        %2106 = vmatpush1.bf16.xpose.msra.mxu0 %v2080
        %2107 = vmatprep.subr.bf16.mxu0 0
        %2108 = vmatpush1.bf16.xpose.msra.mxu0 %v2081
        %2109 = vmatprep.subr.bf16.mxu0 0
        %2110 = vmatpush1.bf16.xpose.msra.mxu0 0
        %2111 = vmatprep.subr.bf16.mxu0 0
        %2112 = vmatpush1.bf16.xpose.msra.mxu0 0
        %2113 = vmatprep.subr.bf16.mxu0 0
        %2114 = vmatpush1.bf16.xpose.msra.mxu0 0
        %2115 = vmatprep.subr.bf16.mxu0 0
        %2116 = vmatpush1.bf16.xpose.msra.mxu0 0
        %2117 = vmatprep.subr.bf16.mxu0 0
        %2118 = vmatpush1.bf16.xpose.msra.mxu0 0
        %2119 = vmatprep.subr.bf16.mxu0 0
        %2120 = vmatpush1.bf16.xpose.msra.mxu0 0
        %2121 = vmatprep.subr.bf16.mxu0 0
        %2122 = vmatpush1.bf16.xpose.msra.mxu0 0
        %2123 = vmatprep.subr.bf16.mxu0 0
        %2124 = vmatpush1.bf16.xpose.msra.mxu0 0
        %2125 = vmatprep.mubr.bf16.mxu0 0
        %2126 = vmatmul.mubr.bf16.gmra.mrb[0].mxu0 %v2082
        %v2127 = vpop.f32.mrb[0].mxu0
        %v2128 = vadd.f32 %v2092, %v2127
        %v2129 = vpop.f32.mrb[0].mxu0
        %v2130 = vpop.f32.mrb[0].mxu0
        %v2131 = vpop.f32.mrb[0].mxu0
        %2132 = vdwg.mxu0
        %2133 = vst.msk [vmem:[%s523 + $0x1] sm:$0x1] %vm1331, %v2128
        %s2134 = sand.u32 %s279, 1
        %s2135 = scalar_lea.sflag [#allocation5], %s2134
        %s2136 = sand.u32 %s279, 1
        %s2137 = smul.addr %s2136, 2
        %s2138 = scalar_lea.vmem [#allocation20], %s2137
        // Predicated region
        $region105: #{shallow_mlp.1} parent=63 // pred_check
          %p2139 = pneg %p289
        $region106: #{shallow_mlp.1} parent=63 // pred_check_branch
          %2141 = sbr.rel (%p2139) target = $region108
        $region107: #{shallow_mlp.1} parent=63 // pred_region
          %s2143 = ssub.s32 32, 32
          %2144 = vsyncadd %s2135, %s2143
          %s2145 = smul.addr %s35, 2
          %s2146 = smul.addr %s2145, 16
          %s2147 = scalar_lea.hbm %s11, %s2146
          %s2149 = sshll.u32 %s2138, 4
          %s2150 = int_to_ptr.vmem [resolvable:$true] %s2149
          %2152 = dma.vmem_to_hbm [thread:$0]  %s2150, 32, %s2147, %s2135
        $region108: #{shallow_mlp.1} parent=63 // pred_fallthru
          _
      $region64: #{shallow_mlp.1} parent=5 // pred_fallthru
        _
      %p2153 = scmp.le.s32.totalorder 2, %s30
      // Predicated region
      $region109: #{shallow_mlp.1} parent=5 // pred_check
        %p2154 = pneg %p2153
      $region110: #{shallow_mlp.1} parent=5 // pred_check_branch
        %2156 = sbr.rel (%p2154) target = $region112
      $region111: #{shallow_mlp.1} parent=5 // pred_region
        %s2157 = ssub.s32 %s30, 2
        // Predicated region
        $region113: #{shallow_mlp.1} parent=111 // pred_check
          %p2158 = pneg %p295
        $region114: #{shallow_mlp.1} parent=111 // pred_check_branch
          %2160 = sbr.rel (%p2158) target = $region116
        $region115: #{shallow_mlp.1} parent=111 // pred_region
          %s2161 = sand.u32 %s280, 1
          %s2162 = scalar_lea.sflag [#allocation5], %s2161
          %s2163 = sand.u32 %s280, 1
          %s2164 = smul.addr %s2163, 2
          %s2165 = scalar_lea.vmem [#allocation20], %s2164
          %2166 = dma.done %s2162, 32
        $region116: #{shallow_mlp.1} parent=111 // pred_fallthru
          _
      $region112: #{shallow_mlp.1} parent=5 // pred_fallthru
        _
    $region6: #{shallow_mlp.1} parent=1 // loop_footer
      %s34 = sadd.s32 1, %s30
    $region7: #{shallow_mlp.1} parent=1 // loop_footer_branch
      %29 = sbr.rel target = $region3
    $region8: #{shallow_mlp.1} parent=1 // loop_exit
      _
    %2167 = vsyncpa [#allocation4], 1
    %s2168 = scalar_lea.sflag [#allocation4], 1
    %2169 = vsyncpa %s2168, 1
    %2170 = vsyncpa [#allocation7], 1
    %2171 = vsyncpa [#allocation10], 1
    %2172 = vsyncpa [#allocation13], 1
    %2173 = vsyncpa [#allocation16], 1
    %2174 = vsyncpa [#allocation19], 1
    %2175 = vsyncpa [#allocation5], 1
    %s2176 = scalar_lea.sflag [#allocation5], 1
    %2177 = vsyncpa %s2176, 1

</llo_original>
